<compile_context>
chip_gen: v7x
topology: tpu7x:2x2x1
jax: 0.10.0
libtpu: 0.0.40
codegen_flags: <defaults>
</compile_context>

<pallas_src>
import functools
import math

import jax
import jax.numpy as jnp
from jax.experimental import pallas as pl
from jax.experimental.pallas import tpu as pltpu


# Feature-path MXU operand dtype (accumulation is always f32).  bf16 is the
# native MXU rate on v5e/v6e/v7x and halves VMEM/vreg footprint of operands.
MATMUL_DTYPE = jnp.bfloat16


def _mm(a, b):
    """Feature-path matmul: bf16 operands, f32 accumulation."""
    return jnp.dot(a.astype(MATMUL_DTYPE), b.astype(MATMUL_DTYPE),
                   preferred_element_type=jnp.float32)


def _mm_bt(a, b):
    """a @ b.T (contract dim 1 of both) with bf16 operands, f32 accumulation."""
    return jax.lax.dot_general(
        a.astype(MATMUL_DTYPE), b.astype(MATMUL_DTYPE),
        (((1,), (1,)), ((), ())), preferred_element_type=jnp.float32)


def _mmf(a, b):
    """Exact f32 matmul (softmax-statistic gather path)."""
    return jnp.dot(a, b, preferred_element_type=jnp.float32)


def _mmf_bt(a, b):
    """Exact f32 a @ b.T."""
    return jax.lax.dot_general(a, b, (((1,), (1,)), ((), ())),
                               preferred_element_type=jnp.float32)


def _vspec():
    return pl.BlockSpec(memory_space=pltpu.MemorySpace.VMEM)


def _vmem_limit_bytes():
    """Generation-aware VMEM limit: 64 MiB on v5e/v6e, ~48 MiB on v7x."""
    try:
        cap = getattr(pltpu.get_tpu_info(), "vmem_capacity_bytes", None)
    except Exception:
        cap = None
    if not cap:
        return 48 * 1024 * 1024          # safe on every generation
    return min(64 * 1024 * 1024, (int(cap) * 3) // 4)


# ---------------------------------------------------------------------------
# Fused Pallas kernel: conv1 -> conv2 -> merge -> class head
# ---------------------------------------------------------------------------

def gan_fused_kernel(
    x_ref, adj_ref, ps_ref, pool_ref,
    wcat1_ref, wsrc1_ref, bst1_ref,
    wcat2_ref, wsrc2_ref, bst2_ref,
    mw_ref, cw1_ref, vecs_ref, cls2_ref,
    xout_ref, cls_ref, a12_ref,
    y_ref, stats_ref,
    *, heads: int, c: int):
    """Inputs:
      x_ref     (N, F)          node features
      adj_ref   (N, N) int8     adjacency[dst, src] (with self loops)
      ps_ref    (2, E, N)       [one-hot(dst); one-hot(src)] per edge
      pool_ref  (G, N)          mean-pool matrix per graph
      per layer: wcat (F, H*C+H) = [W | W@att_dst], wsrc (H, F) = (W@att_src)^T,
                 bst (3, H*C) = [bias; bn_scale; bn_shift]
      mw (H*C,H*C), cw1 (H*C,H*C), vecs (4,H*C)=[merge_b;cls_b1;cls_bn_s;cls_bn_t],
      cls2 (H*C+1, n_cls) = [cls_w2; cls_b2]
    Outputs:
      xout (N, H*C), cls (G, n_cls), a12 (E, 2H) = [alpha_layer1 | alpha_layer2]
    Scratch:
      y_ref (N, H*C) f32, stats_ref (N, 3H) f32 = [a_dst | rowmax | 1/rowsum]
    """
    hc = heads * c
    # int8 adjacency -> additive softmax bias (0 on edges, -1e30 elsewhere).
    maskb = (adj_ref[...].astype(jnp.float32) - 1.0) * 1e30
    pdst = ps_ref[0]                      # (E, N)
    psrc = ps_ref[1]                      # (E, N)

    def gat(x, wcat_ref, wsrc_ref, bst_ref, a_off):
        # One fused projection per layer: [x@W | x@(W@att_dst)] -> (N, H*C+H).
        proj = _mm(x, wcat_ref[...])
        xw, a_dst = proj[:, :hc], proj[:, hc:]
        # Src scores directly in (H, N) row-broadcast orientation via a
        # transposed-RHS MXU pass (no vector-transpose relayout needed).
        a_src_t = _mm_bt(wsrc_ref[...], x)                           # (H, N)

        stats_ref[:, 0:heads] = a_dst                                # cols [0,H)
        # TODO(synk): turn into lax.fori_loop / dst-tiled grid axis if heads/N grow.
        for h in range(heads):
            raw = a_dst[:, h:h + 1] + a_src_t[h:h + 1, :]            # (N, N)
            lg = jnp.where(raw >= 0, raw, 0.2 * raw) + maskb         # GAT leaky + mask
            m = jnp.max(lg, axis=-1, keepdims=True)
            e = jnp.exp(lg - m)
            r = 1.0 / jnp.sum(e, axis=-1, keepdims=True)             # exact softmax
            # Head output straight into its static slice of the layer scratch.
            y_ref[:, h * c:(h + 1) * c] = _mm(e * r, xw[:, h * c:(h + 1) * c])
            stats_ref[:, heads + h:heads + h + 1] = m                # cols [H,2H)
            stats_ref[:, 2 * heads + h:2 * heads + h + 1] = r        # cols [2H,3H)

        # Per-edge attention for all heads from gathered row statistics:
        # two small exact-f32 matmuls instead of H dense (E,N)x(N,N) passes.
        dstat = _mmf(pdst, stats_ref[...])                           # (E, 3H)
        s_src = _mmf_bt(psrc, a_src_t)                               # (E, H)
        raw_e = dstat[:, 0:heads] + s_src
        lg_e = jnp.where(raw_e >= 0, raw_e, 0.2 * raw_e)
        a12_ref[:, a_off:a_off + heads] = (
            jnp.exp(lg_e - dstat[:, heads:2 * heads]) * dstat[:, 2 * heads:])

        # bias + F.leaky_relu + BatchNorm(eval, folded affine) + Dropout(id)
        y = y_ref[...] + bst_ref[0:1, :]
        y = jnp.where(y >= 0, y, 0.01 * y)
        return y * bst_ref[1:2, :] + bst_ref[2:3, :]

    x1 = gat(x_ref[...], wcat1_ref, wsrc1_ref, bst1_ref, 0)
    x2 = gat(x1, wcat2_ref, wsrc2_ref, bst2_ref, heads)

    # merge Linear + leaky_relu
    xm = _mm(x2, mw_ref[...]) + vecs_ref[0:1, :]
    xm = jnp.where(xm >= 0, xm, 0.01 * xm)
    xout_ref[...] = xm

    # global_mean_pool + [Linear, ReLU, BN(eval), Dropout(id), Linear]
    pooled = _mm(pool_ref[...], xm)                                  # (G, H*C)
    hcls = _mm(pooled, cw1_ref[...]) + vecs_ref[1:2, :]
    hcls = jnp.maximum(hcls, 0.0)
    hcls = hcls * vecs_ref[2:3, :] + vecs_ref[3:4, :]
    cls_ref[...] = _mm(hcls, cls2_ref[0:hc, :]) + cls2_ref[hc:hc + 1, :]


# ---------------------------------------------------------------------------
# Wrapper
# ---------------------------------------------------------------------------

def gan_forward(x, edge_index, batch, params, num_graphs):
    n, f_in = x.shape
    heads, c = params["heads"], params["c"]
    hidden = heads * c

    # Add self loops (GATConv default); orientation: adj[dst, src].
    loops = jnp.arange(n, dtype=edge_index.dtype)
    ei = jnp.concatenate([edge_index, jnp.stack([loops, loops])], axis=1)
    e_tot = ei.shape[1]

    adj = jnp.zeros((n, n), jnp.int8).at[ei[1], ei[0]].set(1)        # int8 mask
    ar = jnp.arange(n)[None, :]
    ps = jnp.stack([(ei[1][:, None] == ar).astype(jnp.float32),      # (2, E, N)
                    (ei[0][:, None] == ar).astype(jnp.float32)])

    onehot = (batch[None, :] == jnp.arange(num_graphs)[:, None]).astype(jnp.float32)
    pool = onehot / jnp.maximum(onehot.sum(axis=1, keepdims=True), 1.0)

    def fold_layer(p, fin):
        # Fold a_dst = x @ (W_h @ att_dst_h) into the main projection matmul;
        # keep a_src as (H, F) for the transposed-RHS MXU pass in-kernel.
        w3 = p["w"].reshape(fin, heads, c)
        wdst = jnp.einsum("fhc,hc->fh", w3, p["att_dst"])            # (F, H)
        wsrc_t = jnp.einsum("fhc,hc->hf", w3, p["att_src"])          # (H, F)
        wcat = jnp.concatenate([p["w"], wdst], axis=1)               # (F, H*C+H)
        bst = jnp.concatenate([p["bias"], p["bn_scale"], p["bn_shift"]], axis=0)
        return wcat, wsrc_t, bst

    wcat1, wsrc1, bst1 = fold_layer(params["conv1"], f_in)
    wcat2, wsrc2, bst2 = fold_layer(params["conv2"], hidden)

    vecs = jnp.concatenate([params["merge_b"], params["cls_b1"],
                            params["cls_bn_scale"], params["cls_bn_shift"]], axis=0)
    cls2 = jnp.concatenate([params["cls_w2"], params["cls_b2"]], axis=0)

    num_classes = params["cls_w2"].shape[1]
    kernel = functools.partial(gan_fused_kernel, heads=heads, c=c)
    out_shape = (jax.ShapeDtypeStruct((n, hidden), jnp.float32),
                 jax.ShapeDtypeStruct((num_graphs, num_classes), jnp.float32),
                 jax.ShapeDtypeStruct((e_tot, 2 * heads), jnp.float32))

    x_out, class_out, a12 = pl.pallas_call(
        kernel,
        out_shape=out_shape,
        in_specs=[_vspec()] * 14,
        out_specs=tuple(_vspec() for _ in range(3)),
        scratch_shapes=[pltpu.VMEM((n, hidden), jnp.float32),
                        pltpu.VMEM((n, 3 * heads), jnp.float32)],
        compiler_params=pltpu.CompilerParams(
            vmem_limit_bytes=_vmem_limit_bytes()),
    )(x, adj, ps, pool,
      wcat1, wsrc1, bst1,
      wcat2, wsrc2, bst2,
      params["merge_w"], params["cls_w1"], vecs, cls2)

    # PyG-style (edge_index_with_self_loops, alpha[num_edges, heads])
    a1 = a12[:, :heads]
    a2 = a12[:, heads:]
    return x_out, class_out, (ei, a1), (ei, a2)


# ---------------------------------------------------------------------------
# Deterministic parameter init
# ---------------------------------------------------------------------------

def xavier_uniform(key, shape, fan_in, fan_out):
    a = math.sqrt(6.0 / (fan_in + fan_out))
    return jax.random.uniform(key, shape, jnp.float32, -a, a)


def make_params(key, f_in, hidden, heads, num_classes):
    c = hidden // heads
    ks = jax.random.split(key, 8)
    bn_scale = 1.0 / math.sqrt(1.0 + 1e-5)   # fresh BatchNorm1d running stats (eval)

    def gat_params(k, fin):
        k0, k1, k2 = jax.random.split(k, 3)
        return dict(
            # head-major [fin, heads*c]: column h*c + j == head h, channel j
            w=xavier_uniform(k0, (fin, heads * c), fin, heads * c),
            att_src=xavier_uniform(k1, (heads, c), c, c),
            att_dst=xavier_uniform(k2, (heads, c), c, c),
            bias=jnp.zeros((1, heads * c), jnp.float32),
            bn_scale=jnp.full((1, heads * c), bn_scale, jnp.float32),
            bn_shift=jnp.zeros((1, heads * c), jnp.float32),
        )

    return dict(
        heads=heads, c=c,
        conv1=gat_params(ks[0], f_in),
        conv2=gat_params(ks[1], hidden),
        merge_w=xavier_uniform(ks[2], (hidden, hidden), hidden, hidden),
        merge_b=jnp.zeros((1, hidden), jnp.float32),
        cls_w1=xavier_uniform(ks[3], (hidden, hidden), hidden, hidden),
        cls_b1=jnp.zeros((1, hidden), jnp.float32),
        cls_bn_scale=jnp.full((1, hidden), bn_scale, jnp.float32),
        cls_bn_shift=jnp.zeros((1, hidden), jnp.float32),
        cls_w2=xavier_uniform(ks[4], (hidden, num_classes), hidden, num_classes),
        cls_b2=jnp.zeros((1, num_classes), jnp.float32),
    )


# ---------------------------------------------------------------------------
# Main
# ---------------------------------------------------------------------------

if __name__ == "__main__":
    N, F_IN, HIDDEN, HEADS, NUM_CLASSES, NUM_GRAPHS = 8, 16, 40, 5, 3, 2

    key = jax.random.PRNGKey(0)
    k_x, k_p = jax.random.split(key)

    x = jax.random.normal(k_x, (N, F_IN), jnp.float32)
    # Two 4-node ring graphs (directed edges both ways); nodes 0-3 / 4-7.
    src = jnp.array([0, 1, 1, 2, 2, 3, 3, 0, 4, 5, 5, 6, 6, 7, 7, 4], jnp.int32)
    dst = jnp.array([1, 0, 2, 1, 3, 2, 0, 3, 5, 4, 6, 5, 7, 6, 4, 7], jnp.int32)
    edge_index = jnp.stack([src, dst])
    batch = jnp.array([0, 0, 0, 0, 1, 1, 1, 1], jnp.int32)

    params = make_params(k_p, F_IN, HIDDEN, HEADS, NUM_CLASSES)

    x_out, class_out, aw1, aw2 = gan_forward(x, edge_index, batch, params, NUM_GRAPHS)
    jax.block_until_ready((x_out, class_out, aw1, aw2))

    assert x_out.shape == (N, HIDDEN)
    assert class_out.shape == (NUM_GRAPHS, NUM_CLASSES)
    assert aw1[1].shape == (edge_index.shape[1] + N, HEADS)
    assert aw2[1].shape == (edge_index.shape[1] + N, HEADS)
    assert bool(jnp.all(jnp.isfinite(x_out)))
    assert bool(jnp.all(jnp.isfinite(class_out)))
    # Softmax sanity: per destination node, incoming-edge alphas sum to 1.
    row_sum = jnp.zeros((N, HEADS), jnp.float32).at[aw1[0][1]].add(aw1[1])
    assert bool(jnp.all(jnp.abs(row_sum - 1.0) < 1e-2)), row_sum
    print("KERNEL_OK")
</pallas_src>

<mosaic_0001>
module attributes {stable_mosaic.version = 11 : i64} {
  func.func @gan_fused_kernel(%arg0: memref<8x16xf32, #tpu.memory_space<vmem>>, %arg1: memref<8x8xi8, #tpu.memory_space<vmem>>, %arg2: memref<2x24x8xf32, #tpu.memory_space<vmem>>, %arg3: memref<2x8xf32, #tpu.memory_space<vmem>>, %arg4: memref<16x45xf32, #tpu.memory_space<vmem>>, %arg5: memref<5x16xf32, #tpu.memory_space<vmem>>, %arg6: memref<3x40xf32, #tpu.memory_space<vmem>>, %arg7: memref<40x45xf32, #tpu.memory_space<vmem>>, %arg8: memref<5x40xf32, #tpu.memory_space<vmem>>, %arg9: memref<3x40xf32, #tpu.memory_space<vmem>>, %arg10: memref<40x40xf32, #tpu.memory_space<vmem>>, %arg11: memref<40x40xf32, #tpu.memory_space<vmem>>, %arg12: memref<4x40xf32, #tpu.memory_space<vmem>>, %arg13: memref<41x3xf32, #tpu.memory_space<vmem>>, %arg14: memref<8x40xf32, #tpu.memory_space<vmem>>, %arg15: memref<2x3xf32, #tpu.memory_space<vmem>>, %arg16: memref<24x10xf32, #tpu.memory_space<vmem>>, %arg17: memref<8x40xf32, #tpu.memory_space<vmem>>, %arg18: memref<8x15xf32, #tpu.memory_space<vmem>>) attributes {dimension_semantics = [], scalar_prefetch = 0 : i64, scratch_operands = 2 : i64, tpu.core_type = #tpu.core_type<tc>} {
    %c0 = arith.constant 0 : index
    %c0_0 = arith.constant 0 : index
    %0 = vector.load %arg1[%c0, %c0_0] : memref<8x8xi8, #tpu.memory_space<vmem>>, vector<8x8xi8>
    %1 = arith.sitofp %0 : vector<8x8xi8> to vector<8x8xf32>
    %cst = arith.constant 1.000000e+00 : f32
    %2 = vector.broadcast %cst : f32 to vector<8x8xf32>
    %3 = arith.subf %1, %2 : vector<8x8xf32>
    %cst_1 = arith.constant 1.000000e+30 : f32
    %4 = vector.broadcast %cst_1 : f32 to vector<8x8xf32>
    %5 = arith.mulf %3, %4 : vector<8x8xf32>
    %c0_2 = arith.constant 0 : index
    %c0_3 = arith.constant 0 : index
    %c0_4 = arith.constant 0 : index
    %6 = vector.load %arg2[%c0_2, %c0_3, %c0_4] : memref<2x24x8xf32, #tpu.memory_space<vmem>>, vector<1x24x8xf32>
    %7 = vector.shape_cast %6 : vector<1x24x8xf32> to vector<24x8xf32>
    %c1 = arith.constant 1 : index
    %c0_5 = arith.constant 0 : index
    %c0_6 = arith.constant 0 : index
    %8 = vector.load %arg2[%c1, %c0_5, %c0_6] : memref<2x24x8xf32, #tpu.memory_space<vmem>>, vector<1x24x8xf32>
    %9 = vector.shape_cast %8 : vector<1x24x8xf32> to vector<24x8xf32>
    %c0_7 = arith.constant 0 : index
    %c0_8 = arith.constant 0 : index
    %10 = vector.load %arg0[%c0_7, %c0_8] : memref<8x16xf32, #tpu.memory_space<vmem>>, vector<8x16xf32>
    %c0_9 = arith.constant 0 : index
    %c0_10 = arith.constant 0 : index
    %11 = vector.load %arg4[%c0_9, %c0_10] : memref<16x45xf32, #tpu.memory_space<vmem>>, vector<16x45xf32>
    %12 = arith.truncf %10 : vector<8x16xf32> to vector<8x16xbf16>
    %13 = arith.truncf %11 : vector<16x45xf32> to vector<16x45xbf16>
    %cst_11 = arith.constant dense<0.000000e+00> : vector<8x45xf32>
    %14 = tpu.matmul %12, %13, %cst_11 {dimension_numbers = #tpu.dot_dimension_numbers<[1], [0], [0], [1], [0, 0, 1, 1], [], []>} : vector<8x16xbf16>, vector<16x45xbf16>, vector<8x45xf32> -> vector<8x45xf32>
    %15 = vector.extract_strided_slice %14 {offsets = [0, 0], sizes = [8, 40], strides = [1, 1]} : vector<8x45xf32> to vector<8x40xf32>
    %16 = vector.extract_strided_slice %14 {offsets = [0, 40], sizes = [8, 5], strides = [1, 1]} : vector<8x45xf32> to vector<8x5xf32>
    %c0_12 = arith.constant 0 : index
    %c0_13 = arith.constant 0 : index
    %17 = vector.load %arg5[%c0_12, %c0_13] : memref<5x16xf32, #tpu.memory_space<vmem>>, vector<5x16xf32>
    %18 = arith.truncf %17 : vector<5x16xf32> to vector<5x16xbf16>
    %19 = arith.truncf %10 : vector<8x16xf32> to vector<8x16xbf16>
    %cst_14 = arith.constant dense<0.000000e+00> : vector<5x8xf32>
    %20 = tpu.matmul %18, %19, %cst_14 {dimension_numbers = #tpu.dot_dimension_numbers<[1], [1], [0], [0], [0, 0, 1, 0], [], []>} : vector<5x16xbf16>, vector<8x16xbf16>, vector<5x8xf32> -> vector<5x8xf32>
    %c0_15 = arith.constant 0 : index
    %c0_16 = arith.constant 0 : index
    %21 = vector.load %arg18[%c0_15, %c0_16] : memref<8x15xf32, #tpu.memory_space<vmem>>, vector<8x5xf32>
    tpu.vector_store %arg18[%c0_15, %c0_16], %16 {strides = array<i32>} : memref<8x15xf32, #tpu.memory_space<vmem>>, vector<8x5xf32>,
    %22 = vector.extract_strided_slice %16 {offsets = [0, 0], sizes = [8, 1], strides = [1, 1]} : vector<8x5xf32> to vector<8x1xf32>
    %23 = vector.extract_strided_slice %20 {offsets = [0, 0], sizes = [1, 8], strides = [1, 1]} : vector<5x8xf32> to vector<1x8xf32>
    %24 = vector.broadcast %22 : vector<8x1xf32> to vector<8x8xf32>
    %25 = vector.broadcast %23 : vector<1x8xf32> to vector<8x8xf32>
    %26 = arith.addf %24, %25 : vector<8x8xf32>
    %cst_17 = arith.constant 0.000000e+00 : f32
    %27 = vector.broadcast %cst_17 : f32 to vector<8x8xf32>
    %28 = arith.cmpf oge, %26, %27 : vector<8x8xf32>
    %cst_18 = arith.constant 2.000000e-01 : f32
    %29 = vector.broadcast %cst_18 : f32 to vector<8x8xf32>
    %30 = arith.mulf %29, %26 : vector<8x8xf32>
    %31 = arith.select %28, %26, %30 : vector<8x8xi1>, vector<8x8xf32>
    %32 = arith.addf %31, %5 : vector<8x8xf32>
    %cst_19 = arith.constant dense<0xFF800000> : vector<8xf32>
    %33 = vector.multi_reduction <maximumf>, %32, %cst_19 [1] : vector<8x8xf32> to vector<8xf32>
    %34 = vector.shape_cast %33 : vector<8xf32> to vector<8x1xf32>
    %35 = vector.broadcast %34 : vector<8x1xf32> to vector<8x8xf32>
    %36 = arith.subf %32, %35 : vector<8x8xf32>
    %37 = math.exp %36 : vector<8x8xf32>
    %cst_20 = arith.constant dense<0.000000e+00> : vector<8xf32>
    %38 = vector.multi_reduction <add>, %37, %cst_20 [1] : vector<8x8xf32> to vector<8xf32>
    %39 = vector.shape_cast %38 : vector<8xf32> to vector<8x1xf32>
    %cst_21 = arith.constant 1.000000e+00 : f32
    %40 = vector.broadcast %cst_21 : f32 to vector<8x1xf32>
    %41 = arith.divf %40, %39 : vector<8x1xf32>
    %42 = vector.broadcast %41 : vector<8x1xf32> to vector<8x8xf32>
    %43 = arith.mulf %37, %42 : vector<8x8xf32>
    %44 = vector.extract_strided_slice %15 {offsets = [0, 0], sizes = [8, 8], strides = [1, 1]} : vector<8x40xf32> to vector<8x8xf32>
    %45 = arith.truncf %43 : vector<8x8xf32> to vector<8x8xbf16>
    %46 = arith.truncf %44 : vector<8x8xf32> to vector<8x8xbf16>
    %cst_22 = arith.constant dense<0.000000e+00> : vector<8x8xf32>
    %47 = tpu.matmul %45, %46, %cst_22 {dimension_numbers = #tpu.dot_dimension_numbers<[1], [0], [0], [1], [0, 0, 1, 1], [], []>} : vector<8x8xbf16>, vector<8x8xbf16>, vector<8x8xf32> -> vector<8x8xf32>
    %c0_23 = arith.constant 0 : index
    %c0_24 = arith.constant 0 : index
    %48 = vector.load %arg17[%c0_23, %c0_24] : memref<8x40xf32, #tpu.memory_space<vmem>>, vector<8x8xf32>
    tpu.vector_store %arg17[%c0_23, %c0_24], %47 {strides = array<i32>} : memref<8x40xf32, #tpu.memory_space<vmem>>, vector<8x8xf32>,
    %c0_25 = arith.constant 0 : index
    %c5 = arith.constant 5 : index
    %49 = vector.load %arg18[%c0_25, %c5] : memref<8x15xf32, #tpu.memory_space<vmem>>, vector<8x1xf32>
    tpu.vector_store %arg18[%c0_25, %c5], %34 {strides = array<i32>} : memref<8x15xf32, #tpu.memory_space<vmem>>, vector<8x1xf32>,
    %c0_26 = arith.constant 0 : index
    %c10 = arith.constant 10 : index
    %50 = vector.load %arg18[%c0_26, %c10] : memref<8x15xf32, #tpu.memory_space<vmem>>, vector<8x1xf32>
    tpu.vector_store %arg18[%c0_26, %c10], %41 {strides = array<i32>} : memref<8x15xf32, #tpu.memory_space<vmem>>, vector<8x1xf32>,
    %51 = vector.extract_strided_slice %16 {offsets = [0, 1], sizes = [8, 1], strides = [1, 1]} : vector<8x5xf32> to vector<8x1xf32>
    %52 = vector.extract_strided_slice %20 {offsets = [1, 0], sizes = [1, 8], strides = [1, 1]} : vector<5x8xf32> to vector<1x8xf32>
    %53 = vector.broadcast %51 : vector<8x1xf32> to vector<8x8xf32>
    %54 = vector.broadcast %52 : vector<1x8xf32> to vector<8x8xf32>
    %55 = arith.addf %53, %54 : vector<8x8xf32>
    %cst_27 = arith.constant 0.000000e+00 : f32
    %56 = vector.broadcast %cst_27 : f32 to vector<8x8xf32>
    %57 = arith.cmpf oge, %55, %56 : vector<8x8xf32>
    %cst_28 = arith.constant 2.000000e-01 : f32
    %58 = vector.broadcast %cst_28 : f32 to vector<8x8xf32>
    %59 = arith.mulf %58, %55 : vector<8x8xf32>
    %60 = arith.select %57, %55, %59 : vector<8x8xi1>, vector<8x8xf32>
    %61 = arith.addf %60, %5 : vector<8x8xf32>
    %cst_29 = arith.constant dense<0xFF800000> : vector<8xf32>
    %62 = vector.multi_reduction <maximumf>, %61, %cst_29 [1] : vector<8x8xf32> to vector<8xf32>
    %63 = vector.shape_cast %62 : vector<8xf32> to vector<8x1xf32>
    %64 = vector.broadcast %63 : vector<8x1xf32> to vector<8x8xf32>
    %65 = arith.subf %61, %64 : vector<8x8xf32>
    %66 = math.exp %65 : vector<8x8xf32>
    %cst_30 = arith.constant dense<0.000000e+00> : vector<8xf32>
    %67 = vector.multi_reduction <add>, %66, %cst_30 [1] : vector<8x8xf32> to vector<8xf32>
    %68 = vector.shape_cast %67 : vector<8xf32> to vector<8x1xf32>
    %cst_31 = arith.constant 1.000000e+00 : f32
    %69 = vector.broadcast %cst_31 : f32 to vector<8x1xf32>
    %70 = arith.divf %69, %68 : vector<8x1xf32>
    %71 = vector.broadcast %70 : vector<8x1xf32> to vector<8x8xf32>
    %72 = arith.mulf %66, %71 : vector<8x8xf32>
    %73 = vector.extract_strided_slice %15 {offsets = [0, 8], sizes = [8, 8], strides = [1, 1]} : vector<8x40xf32> to vector<8x8xf32>
    %74 = arith.truncf %72 : vector<8x8xf32> to vector<8x8xbf16>
    %75 = arith.truncf %73 : vector<8x8xf32> to vector<8x8xbf16>
    %cst_32 = arith.constant dense<0.000000e+00> : vector<8x8xf32>
    %76 = tpu.matmul %74, %75, %cst_32 {dimension_numbers = #tpu.dot_dimension_numbers<[1], [0], [0], [1], [0, 0, 1, 1], [], []>} : vector<8x8xbf16>, vector<8x8xbf16>, vector<8x8xf32> -> vector<8x8xf32>
    %c0_33 = arith.constant 0 : index
    %c8 = arith.constant 8 : index
    %77 = vector.load %arg17[%c0_33, %c8] : memref<8x40xf32, #tpu.memory_space<vmem>>, vector<8x8xf32>
    tpu.vector_store %arg17[%c0_33, %c8], %76 {strides = array<i32>} : memref<8x40xf32, #tpu.memory_space<vmem>>, vector<8x8xf32>,
    %c0_34 = arith.constant 0 : index
    %c6 = arith.constant 6 : index
    %78 = vector.load %arg18[%c0_34, %c6] : memref<8x15xf32, #tpu.memory_space<vmem>>, vector<8x1xf32>
    tpu.vector_store %arg18[%c0_34, %c6], %63 {strides = array<i32>} : memref<8x15xf32, #tpu.memory_space<vmem>>, vector<8x1xf32>,
    %c0_35 = arith.constant 0 : index
    %c11 = arith.constant 11 : index
    %79 = vector.load %arg18[%c0_35, %c11] : memref<8x15xf32, #tpu.memory_space<vmem>>, vector<8x1xf32>
    tpu.vector_store %arg18[%c0_35, %c11], %70 {strides = array<i32>} : memref<8x15xf32, #tpu.memory_space<vmem>>, vector<8x1xf32>,
    %80 = vector.extract_strided_slice %16 {offsets = [0, 2], sizes = [8, 1], strides = [1, 1]} : vector<8x5xf32> to vector<8x1xf32>
    %81 = vector.extract_strided_slice %20 {offsets = [2, 0], sizes = [1, 8], strides = [1, 1]} : vector<5x8xf32> to vector<1x8xf32>
    %82 = vector.broadcast %80 : vector<8x1xf32> to vector<8x8xf32>
    %83 = vector.broadcast %81 : vector<1x8xf32> to vector<8x8xf32>
    %84 = arith.addf %82, %83 : vector<8x8xf32>
    %cst_36 = arith.constant 0.000000e+00 : f32
    %85 = vector.broadcast %cst_36 : f32 to vector<8x8xf32>
    %86 = arith.cmpf oge, %84, %85 : vector<8x8xf32>
    %cst_37 = arith.constant 2.000000e-01 : f32
    %87 = vector.broadcast %cst_37 : f32 to vector<8x8xf32>
    %88 = arith.mulf %87, %84 : vector<8x8xf32>
    %89 = arith.select %86, %84, %88 : vector<8x8xi1>, vector<8x8xf32>
    %90 = arith.addf %89, %5 : vector<8x8xf32>
    %cst_38 = arith.constant dense<0xFF800000> : vector<8xf32>
    %91 = vector.multi_reduction <maximumf>, %90, %cst_38 [1] : vector<8x8xf32> to vector<8xf32>
    %92 = vector.shape_cast %91 : vector<8xf32> to vector<8x1xf32>
    %93 = vector.broadcast %92 : vector<8x1xf32> to vector<8x8xf32>
    %94 = arith.subf %90, %93 : vector<8x8xf32>
    %95 = math.exp %94 : vector<8x8xf32>
    %cst_39 = arith.constant dense<0.000000e+00> : vector<8xf32>
    %96 = vector.multi_reduction <add>, %95, %cst_39 [1] : vector<8x8xf32> to vector<8xf32>
    %97 = vector.shape_cast %96 : vector<8xf32> to vector<8x1xf32>
    %cst_40 = arith.constant 1.000000e+00 : f32
    %98 = vector.broadcast %cst_40 : f32 to vector<8x1xf32>
    %99 = arith.divf %98, %97 : vector<8x1xf32>
    %100 = vector.broadcast %99 : vector<8x1xf32> to vector<8x8xf32>
    %101 = arith.mulf %95, %100 : vector<8x8xf32>
    %102 = vector.extract_strided_slice %15 {offsets = [0, 16], sizes = [8, 8], strides = [1, 1]} : vector<8x40xf32> to vector<8x8xf32>
    %103 = arith.truncf %101 : vector<8x8xf32> to vector<8x8xbf16>
    %104 = arith.truncf %102 : vector<8x8xf32> to vector<8x8xbf16>
    %cst_41 = arith.constant dense<0.000000e+00> : vector<8x8xf32>
    %105 = tpu.matmul %103, %104, %cst_41 {dimension_numbers = #tpu.dot_dimension_numbers<[1], [0], [0], [1], [0, 0, 1, 1], [], []>} : vector<8x8xbf16>, vector<8x8xbf16>, vector<8x8xf32> -> vector<8x8xf32>
    %c0_42 = arith.constant 0 : index
    %c16 = arith.constant 16 : index
    %106 = vector.load %arg17[%c0_42, %c16] : memref<8x40xf32, #tpu.memory_space<vmem>>, vector<8x8xf32>
    tpu.vector_store %arg17[%c0_42, %c16], %105 {strides = array<i32>} : memref<8x40xf32, #tpu.memory_space<vmem>>, vector<8x8xf32>,
    %c0_43 = arith.constant 0 : index
    %c7 = arith.constant 7 : index
    %107 = vector.load %arg18[%c0_43, %c7] : memref<8x15xf32, #tpu.memory_space<vmem>>, vector<8x1xf32>
    tpu.vector_store %arg18[%c0_43, %c7], %92 {strides = array<i32>} : memref<8x15xf32, #tpu.memory_space<vmem>>, vector<8x1xf32>,
    %c0_44 = arith.constant 0 : index
    %c12 = arith.constant 12 : index
    %108 = vector.load %arg18[%c0_44, %c12] : memref<8x15xf32, #tpu.memory_space<vmem>>, vector<8x1xf32>
    tpu.vector_store %arg18[%c0_44, %c12], %99 {strides = array<i32>} : memref<8x15xf32, #tpu.memory_space<vmem>>, vector<8x1xf32>,
    %109 = vector.extract_strided_slice %16 {offsets = [0, 3], sizes = [8, 1], strides = [1, 1]} : vector<8x5xf32> to vector<8x1xf32>
    %110 = vector.extract_strided_slice %20 {offsets = [3, 0], sizes = [1, 8], strides = [1, 1]} : vector<5x8xf32> to vector<1x8xf32>
    %111 = vector.broadcast %109 : vector<8x1xf32> to vector<8x8xf32>
    %112 = vector.broadcast %110 : vector<1x8xf32> to vector<8x8xf32>
    %113 = arith.addf %111, %112 : vector<8x8xf32>
    %cst_45 = arith.constant 0.000000e+00 : f32
    %114 = vector.broadcast %cst_45 : f32 to vector<8x8xf32>
    %115 = arith.cmpf oge, %113, %114 : vector<8x8xf32>
    %cst_46 = arith.constant 2.000000e-01 : f32
    %116 = vector.broadcast %cst_46 : f32 to vector<8x8xf32>
    %117 = arith.mulf %116, %113 : vector<8x8xf32>
    %118 = arith.select %115, %113, %117 : vector<8x8xi1>, vector<8x8xf32>
    %119 = arith.addf %118, %5 : vector<8x8xf32>
    %cst_47 = arith.constant dense<0xFF800000> : vector<8xf32>
    %120 = vector.multi_reduction <maximumf>, %119, %cst_47 [1] : vector<8x8xf32> to vector<8xf32>
    %121 = vector.shape_cast %120 : vector<8xf32> to vector<8x1xf32>
    %122 = vector.broadcast %121 : vector<8x1xf32> to vector<8x8xf32>
    %123 = arith.subf %119, %122 : vector<8x8xf32>
    %124 = math.exp %123 : vector<8x8xf32>
    %cst_48 = arith.constant dense<0.000000e+00> : vector<8xf32>
    %125 = vector.multi_reduction <add>, %124, %cst_48 [1] : vector<8x8xf32> to vector<8xf32>
    %126 = vector.shape_cast %125 : vector<8xf32> to vector<8x1xf32>
    %cst_49 = arith.constant 1.000000e+00 : f32
    %127 = vector.broadcast %cst_49 : f32 to vector<8x1xf32>
    %128 = arith.divf %127, %126 : vector<8x1xf32>
    %129 = vector.broadcast %128 : vector<8x1xf32> to vector<8x8xf32>
    %130 = arith.mulf %124, %129 : vector<8x8xf32>
    %131 = vector.extract_strided_slice %15 {offsets = [0, 24], sizes = [8, 8], strides = [1, 1]} : vector<8x40xf32> to vector<8x8xf32>
    %132 = arith.truncf %130 : vector<8x8xf32> to vector<8x8xbf16>
    %133 = arith.truncf %131 : vector<8x8xf32> to vector<8x8xbf16>
    %cst_50 = arith.constant dense<0.000000e+00> : vector<8x8xf32>
    %134 = tpu.matmul %132, %133, %cst_50 {dimension_numbers = #tpu.dot_dimension_numbers<[1], [0], [0], [1], [0, 0, 1, 1], [], []>} : vector<8x8xbf16>, vector<8x8xbf16>, vector<8x8xf32> -> vector<8x8xf32>
    %c0_51 = arith.constant 0 : index
    %c24 = arith.constant 24 : index
    %135 = vector.load %arg17[%c0_51, %c24] : memref<8x40xf32, #tpu.memory_space<vmem>>, vector<8x8xf32>
    tpu.vector_store %arg17[%c0_51, %c24], %134 {strides = array<i32>} : memref<8x40xf32, #tpu.memory_space<vmem>>, vector<8x8xf32>,
    %c0_52 = arith.constant 0 : index
    %c8_53 = arith.constant 8 : index
    %136 = vector.load %arg18[%c0_52, %c8_53] : memref<8x15xf32, #tpu.memory_space<vmem>>, vector<8x1xf32>
    tpu.vector_store %arg18[%c0_52, %c8_53], %121 {strides = array<i32>} : memref<8x15xf32, #tpu.memory_space<vmem>>, vector<8x1xf32>,
    %c0_54 = arith.constant 0 : index
    %c13 = arith.constant 13 : index
    %137 = vector.load %arg18[%c0_54, %c13] : memref<8x15xf32, #tpu.memory_space<vmem>>, vector<8x1xf32>
    tpu.vector_store %arg18[%c0_54, %c13], %128 {strides = array<i32>} : memref<8x15xf32, #tpu.memory_space<vmem>>, vector<8x1xf32>,
    %138 = vector.extract_strided_slice %16 {offsets = [0, 4], sizes = [8, 1], strides = [1, 1]} : vector<8x5xf32> to vector<8x1xf32>
    %139 = vector.extract_strided_slice %20 {offsets = [4, 0], sizes = [1, 8], strides = [1, 1]} : vector<5x8xf32> to vector<1x8xf32>
    %140 = vector.broadcast %138 : vector<8x1xf32> to vector<8x8xf32>
    %141 = vector.broadcast %139 : vector<1x8xf32> to vector<8x8xf32>
    %142 = arith.addf %140, %141 : vector<8x8xf32>
    %cst_55 = arith.constant 0.000000e+00 : f32
    %143 = vector.broadcast %cst_55 : f32 to vector<8x8xf32>
    %144 = arith.cmpf oge, %142, %143 : vector<8x8xf32>
    %cst_56 = arith.constant 2.000000e-01 : f32
    %145 = vector.broadcast %cst_56 : f32 to vector<8x8xf32>
    %146 = arith.mulf %145, %142 : vector<8x8xf32>
    %147 = arith.select %144, %142, %146 : vector<8x8xi1>, vector<8x8xf32>
    %148 = arith.addf %147, %5 : vector<8x8xf32>
    %cst_57 = arith.constant dense<0xFF800000> : vector<8xf32>
    %149 = vector.multi_reduction <maximumf>, %148, %cst_57 [1] : vector<8x8xf32> to vector<8xf32>
    %150 = vector.shape_cast %149 : vector<8xf32> to vector<8x1xf32>
    %151 = vector.broadcast %150 : vector<8x1xf32> to vector<8x8xf32>
    %152 = arith.subf %148, %151 : vector<8x8xf32>
    %153 = math.exp %152 : vector<8x8xf32>
    %cst_58 = arith.constant dense<0.000000e+00> : vector<8xf32>
    %154 = vector.multi_reduction <add>, %153, %cst_58 [1] : vector<8x8xf32> to vector<8xf32>
    %155 = vector.shape_cast %154 : vector<8xf32> to vector<8x1xf32>
    %cst_59 = arith.constant 1.000000e+00 : f32
    %156 = vector.broadcast %cst_59 : f32 to vector<8x1xf32>
    %157 = arith.divf %156, %155 : vector<8x1xf32>
    %158 = vector.broadcast %157 : vector<8x1xf32> to vector<8x8xf32>
    %159 = arith.mulf %153, %158 : vector<8x8xf32>
    %160 = vector.extract_strided_slice %15 {offsets = [0, 32], sizes = [8, 8], strides = [1, 1]} : vector<8x40xf32> to vector<8x8xf32>
    %161 = arith.truncf %159 : vector<8x8xf32> to vector<8x8xbf16>
    %162 = arith.truncf %160 : vector<8x8xf32> to vector<8x8xbf16>
    %cst_60 = arith.constant dense<0.000000e+00> : vector<8x8xf32>
    %163 = tpu.matmul %161, %162, %cst_60 {dimension_numbers = #tpu.dot_dimension_numbers<[1], [0], [0], [1], [0, 0, 1, 1], [], []>} : vector<8x8xbf16>, vector<8x8xbf16>, vector<8x8xf32> -> vector<8x8xf32>
    %c0_61 = arith.constant 0 : index
    %c32 = arith.constant 32 : index
    %164 = vector.load %arg17[%c0_61, %c32] : memref<8x40xf32, #tpu.memory_space<vmem>>, vector<8x8xf32>
    tpu.vector_store %arg17[%c0_61, %c32], %163 {strides = array<i32>} : memref<8x40xf32, #tpu.memory_space<vmem>>, vector<8x8xf32>,
    %c0_62 = arith.constant 0 : index
    %c9 = arith.constant 9 : index
    %165 = vector.load %arg18[%c0_62, %c9] : memref<8x15xf32, #tpu.memory_space<vmem>>, vector<8x1xf32>
    tpu.vector_store %arg18[%c0_62, %c9], %150 {strides = array<i32>} : memref<8x15xf32, #tpu.memory_space<vmem>>, vector<8x1xf32>,
    %c0_63 = arith.constant 0 : index
    %c14 = arith.constant 14 : index
    %166 = vector.load %arg18[%c0_63, %c14] : memref<8x15xf32, #tpu.memory_space<vmem>>, vector<8x1xf32>
    tpu.vector_store %arg18[%c0_63, %c14], %157 {strides = array<i32>} : memref<8x15xf32, #tpu.memory_space<vmem>>, vector<8x1xf32>,
    %c0_64 = arith.constant 0 : index
    %c0_65 = arith.constant 0 : index
    %167 = vector.load %arg18[%c0_64, %c0_65] : memref<8x15xf32, #tpu.memory_space<vmem>>, vector<8x15xf32>
    %cst_66 = arith.constant dense<0.000000e+00> : vector<24x15xf32>
    %168 = tpu.matmul %7, %167, %cst_66 {dimension_numbers = #tpu.dot_dimension_numbers<[1], [0], [0], [1], [0, 0, 1, 1], [], []>} : vector<24x8xf32>, vector<8x15xf32>, vector<24x15xf32> -> vector<24x15xf32>
    %cst_67 = arith.constant dense<0.000000e+00> : vector<24x5xf32>
    %169 = tpu.matmul %9, %20, %cst_67 {dimension_numbers = #tpu.dot_dimension_numbers<[1], [1], [0], [0], [0, 0, 1, 0], [], []>} : vector<24x8xf32>, vector<5x8xf32>, vector<24x5xf32> -> vector<24x5xf32>
    %170 = vector.extract_strided_slice %168 {offsets = [0, 0], sizes = [24, 5], strides = [1, 1]} : vector<24x15xf32> to vector<24x5xf32>
    %171 = arith.addf %170, %169 : vector<24x5xf32>
    %cst_68 = arith.constant 0.000000e+00 : f32
    %172 = vector.broadcast %cst_68 : f32 to vector<24x5xf32>
    %173 = arith.cmpf oge, %171, %172 : vector<24x5xf32>
    %cst_69 = arith.constant 2.000000e-01 : f32
    %174 = vector.broadcast %cst_69 : f32 to vector<24x5xf32>
    %175 = arith.mulf %174, %171 : vector<24x5xf32>
    %176 = arith.select %173, %171, %175 : vector<24x5xi1>, vector<24x5xf32>
    %177 = vector.extract_strided_slice %168 {offsets = [0, 5], sizes = [24, 5], strides = [1, 1]} : vector<24x15xf32> to vector<24x5xf32>
    %178 = arith.subf %176, %177 : vector<24x5xf32>
    %179 = math.exp %178 : vector<24x5xf32>
    %180 = vector.extract_strided_slice %168 {offsets = [0, 10], sizes = [24, 5], strides = [1, 1]} : vector<24x15xf32> to vector<24x5xf32>
    %181 = arith.mulf %179, %180 : vector<24x5xf32>
    %c0_70 = arith.constant 0 : index
    %c0_71 = arith.constant 0 : index
    %182 = vector.load %arg16[%c0_70, %c0_71] : memref<24x10xf32, #tpu.memory_space<vmem>>, vector<24x5xf32>
    tpu.vector_store %arg16[%c0_70, %c0_71], %181 {strides = array<i32>} : memref<24x10xf32, #tpu.memory_space<vmem>>, vector<24x5xf32>,
    %c0_72 = arith.constant 0 : index
    %c0_73 = arith.constant 0 : index
    %183 = vector.load %arg17[%c0_72, %c0_73] : memref<8x40xf32, #tpu.memory_space<vmem>>, vector<8x40xf32>
    %c0_74 = arith.constant 0 : index
    %c0_75 = arith.constant 0 : index
    %184 = vector.load %arg6[%c0_74, %c0_75] : memref<3x40xf32, #tpu.memory_space<vmem>>, vector<1x40xf32>
    %185 = vector.broadcast %184 : vector<1x40xf32> to vector<8x40xf32>
    %186 = arith.addf %183, %185 : vector<8x40xf32>
    %cst_76 = arith.constant 0.000000e+00 : f32
    %187 = vector.broadcast %cst_76 : f32 to vector<8x40xf32>
    %188 = arith.cmpf oge, %186, %187 : vector<8x40xf32>
    %cst_77 = arith.constant 0.00999999977 : f32
    %189 = vector.broadcast %cst_77 : f32 to vector<8x40xf32>
    %190 = arith.mulf %189, %186 : vector<8x40xf32>
    %191 = arith.select %188, %186, %190 : vector<8x40xi1>, vector<8x40xf32>
    %c1_78 = arith.constant 1 : index
    %c0_79 = arith.constant 0 : index
    %192 = vector.load %arg6[%c1_78, %c0_79] : memref<3x40xf32, #tpu.memory_space<vmem>>, vector<1x40xf32>
    %193 = vector.broadcast %192 : vector<1x40xf32> to vector<8x40xf32>
    %194 = arith.mulf %191, %193 : vector<8x40xf32>
    %c2 = arith.constant 2 : index
    %c0_80 = arith.constant 0 : index
    %195 = vector.load %arg6[%c2, %c0_80] : memref<3x40xf32, #tpu.memory_space<vmem>>, vector<1x40xf32>
    %196 = vector.broadcast %195 : vector<1x40xf32> to vector<8x40xf32>
    %197 = arith.addf %194, %196 : vector<8x40xf32>
    %c0_81 = arith.constant 0 : index
    %c0_82 = arith.constant 0 : index
    %198 = vector.load %arg7[%c0_81, %c0_82] : memref<40x45xf32, #tpu.memory_space<vmem>>, vector<40x45xf32>
    %199 = arith.truncf %197 : vector<8x40xf32> to vector<8x40xbf16>
    %200 = arith.truncf %198 : vector<40x45xf32> to vector<40x45xbf16>
    %cst_83 = arith.constant dense<0.000000e+00> : vector<8x45xf32>
    %201 = tpu.matmul %199, %200, %cst_83 {dimension_numbers = #tpu.dot_dimension_numbers<[1], [0], [0], [1], [0, 0, 1, 1], [], []>} : vector<8x40xbf16>, vector<40x45xbf16>, vector<8x45xf32> -> vector<8x45xf32>
    %202 = vector.extract_strided_slice %201 {offsets = [0, 0], sizes = [8, 40], strides = [1, 1]} : vector<8x45xf32> to vector<8x40xf32>
    %203 = vector.extract_strided_slice %201 {offsets = [0, 40], sizes = [8, 5], strides = [1, 1]} : vector<8x45xf32> to vector<8x5xf32>
    %c0_84 = arith.constant 0 : index
    %c0_85 = arith.constant 0 : index
    %204 = vector.load %arg8[%c0_84, %c0_85] : memref<5x40xf32, #tpu.memory_space<vmem>>, vector<5x40xf32>
    %205 = arith.truncf %204 : vector<5x40xf32> to vector<5x40xbf16>
    %206 = arith.truncf %197 : vector<8x40xf32> to vector<8x40xbf16>
    %cst_86 = arith.constant dense<0.000000e+00> : vector<5x8xf32>
    %207 = tpu.matmul %205, %206, %cst_86 {dimension_numbers = #tpu.dot_dimension_numbers<[1], [1], [0], [0], [0, 0, 1, 0], [], []>} : vector<5x40xbf16>, vector<8x40xbf16>, vector<5x8xf32> -> vector<5x8xf32>
    %c0_87 = arith.constant 0 : index
    %c0_88 = arith.constant 0 : index
    %208 = vector.load %arg18[%c0_87, %c0_88] : memref<8x15xf32, #tpu.memory_space<vmem>>, vector<8x5xf32>
    tpu.vector_store %arg18[%c0_87, %c0_88], %203 {strides = array<i32>} : memref<8x15xf32, #tpu.memory_space<vmem>>, vector<8x5xf32>,
    %209 = vector.extract_strided_slice %203 {offsets = [0, 0], sizes = [8, 1], strides = [1, 1]} : vector<8x5xf32> to vector<8x1xf32>
    %210 = vector.extract_strided_slice %207 {offsets = [0, 0], sizes = [1, 8], strides = [1, 1]} : vector<5x8xf32> to vector<1x8xf32>
    %211 = vector.broadcast %209 : vector<8x1xf32> to vector<8x8xf32>
    %212 = vector.broadcast %210 : vector<1x8xf32> to vector<8x8xf32>
    %213 = arith.addf %211, %212 : vector<8x8xf32>
    %cst_89 = arith.constant 0.000000e+00 : f32
    %214 = vector.broadcast %cst_89 : f32 to vector<8x8xf32>
    %215 = arith.cmpf oge, %213, %214 : vector<8x8xf32>
    %cst_90 = arith.constant 2.000000e-01 : f32
    %216 = vector.broadcast %cst_90 : f32 to vector<8x8xf32>
    %217 = arith.mulf %216, %213 : vector<8x8xf32>
    %218 = arith.select %215, %213, %217 : vector<8x8xi1>, vector<8x8xf32>
    %219 = arith.addf %218, %5 : vector<8x8xf32>
    %cst_91 = arith.constant dense<0xFF800000> : vector<8xf32>
    %220 = vector.multi_reduction <maximumf>, %219, %cst_91 [1] : vector<8x8xf32> to vector<8xf32>
    %221 = vector.shape_cast %220 : vector<8xf32> to vector<8x1xf32>
    %222 = vector.broadcast %221 : vector<8x1xf32> to vector<8x8xf32>
    %223 = arith.subf %219, %222 : vector<8x8xf32>
    %224 = math.exp %223 : vector<8x8xf32>
    %cst_92 = arith.constant dense<0.000000e+00> : vector<8xf32>
    %225 = vector.multi_reduction <add>, %224, %cst_92 [1] : vector<8x8xf32> to vector<8xf32>
    %226 = vector.shape_cast %225 : vector<8xf32> to vector<8x1xf32>
    %cst_93 = arith.constant 1.000000e+00 : f32
    %227 = vector.broadcast %cst_93 : f32 to vector<8x1xf32>
    %228 = arith.divf %227, %226 : vector<8x1xf32>
    %229 = vector.broadcast %228 : vector<8x1xf32> to vector<8x8xf32>
    %230 = arith.mulf %224, %229 : vector<8x8xf32>
    %231 = vector.extract_strided_slice %202 {offsets = [0, 0], sizes = [8, 8], strides = [1, 1]} : vector<8x40xf32> to vector<8x8xf32>
    %232 = arith.truncf %230 : vector<8x8xf32> to vector<8x8xbf16>
    %233 = arith.truncf %231 : vector<8x8xf32> to vector<8x8xbf16>
    %cst_94 = arith.constant dense<0.000000e+00> : vector<8x8xf32>
    %234 = tpu.matmul %232, %233, %cst_94 {dimension_numbers = #tpu.dot_dimension_numbers<[1], [0], [0], [1], [0, 0, 1, 1], [], []>} : vector<8x8xbf16>, vector<8x8xbf16>, vector<8x8xf32> -> vector<8x8xf32>
    %c0_95 = arith.constant 0 : index
    %c0_96 = arith.constant 0 : index
    %235 = vector.load %arg17[%c0_95, %c0_96] : memref<8x40xf32, #tpu.memory_space<vmem>>, vector<8x8xf32>
    tpu.vector_store %arg17[%c0_95, %c0_96], %234 {strides = array<i32>} : memref<8x40xf32, #tpu.memory_space<vmem>>, vector<8x8xf32>,
    %c0_97 = arith.constant 0 : index
    %c5_98 = arith.constant 5 : index
    %236 = vector.load %arg18[%c0_97, %c5_98] : memref<8x15xf32, #tpu.memory_space<vmem>>, vector<8x1xf32>
    tpu.vector_store %arg18[%c0_97, %c5_98], %221 {strides = array<i32>} : memref<8x15xf32, #tpu.memory_space<vmem>>, vector<8x1xf32>,
    %c0_99 = arith.constant 0 : index
    %c10_100 = arith.constant 10 : index
    %237 = vector.load %arg18[%c0_99, %c10_100] : memref<8x15xf32, #tpu.memory_space<vmem>>, vector<8x1xf32>
    tpu.vector_store %arg18[%c0_99, %c10_100], %228 {strides = array<i32>} : memref<8x15xf32, #tpu.memory_space<vmem>>, vector<8x1xf32>,
    %238 = vector.extract_strided_slice %203 {offsets = [0, 1], sizes = [8, 1], strides = [1, 1]} : vector<8x5xf32> to vector<8x1xf32>
    %239 = vector.extract_strided_slice %207 {offsets = [1, 0], sizes = [1, 8], strides = [1, 1]} : vector<5x8xf32> to vector<1x8xf32>
    %240 = vector.broadcast %238 : vector<8x1xf32> to vector<8x8xf32>
    %241 = vector.broadcast %239 : vector<1x8xf32> to vector<8x8xf32>
    %242 = arith.addf %240, %241 : vector<8x8xf32>
    %cst_101 = arith.constant 0.000000e+00 : f32
    %243 = vector.broadcast %cst_101 : f32 to vector<8x8xf32>
    %244 = arith.cmpf oge, %242, %243 : vector<8x8xf32>
    %cst_102 = arith.constant 2.000000e-01 : f32
    %245 = vector.broadcast %cst_102 : f32 to vector<8x8xf32>
    %246 = arith.mulf %245, %242 : vector<8x8xf32>
    %247 = arith.select %244, %242, %246 : vector<8x8xi1>, vector<8x8xf32>
    %248 = arith.addf %247, %5 : vector<8x8xf32>
    %cst_103 = arith.constant dense<0xFF800000> : vector<8xf32>
    %249 = vector.multi_reduction <maximumf>, %248, %cst_103 [1] : vector<8x8xf32> to vector<8xf32>
    %250 = vector.shape_cast %249 : vector<8xf32> to vector<8x1xf32>
    %251 = vector.broadcast %250 : vector<8x1xf32> to vector<8x8xf32>
    %252 = arith.subf %248, %251 : vector<8x8xf32>
    %253 = math.exp %252 : vector<8x8xf32>
    %cst_104 = arith.constant dense<0.000000e+00> : vector<8xf32>
    %254 = vector.multi_reduction <add>, %253, %cst_104 [1] : vector<8x8xf32> to vector<8xf32>
    %255 = vector.shape_cast %254 : vector<8xf32> to vector<8x1xf32>
    %cst_105 = arith.constant 1.000000e+00 : f32
    %256 = vector.broadcast %cst_105 : f32 to vector<8x1xf32>
    %257 = arith.divf %256, %255 : vector<8x1xf32>
    %258 = vector.broadcast %257 : vector<8x1xf32> to vector<8x8xf32>
    %259 = arith.mulf %253, %258 : vector<8x8xf32>
    %260 = vector.extract_strided_slice %202 {offsets = [0, 8], sizes = [8, 8], strides = [1, 1]} : vector<8x40xf32> to vector<8x8xf32>
    %261 = arith.truncf %259 : vector<8x8xf32> to vector<8x8xbf16>
    %262 = arith.truncf %260 : vector<8x8xf32> to vector<8x8xbf16>
    %cst_106 = arith.constant dense<0.000000e+00> : vector<8x8xf32>
    %263 = tpu.matmul %261, %262, %cst_106 {dimension_numbers = #tpu.dot_dimension_numbers<[1], [0], [0], [1], [0, 0, 1, 1], [], []>} : vector<8x8xbf16>, vector<8x8xbf16>, vector<8x8xf32> -> vector<8x8xf32>
    %c0_107 = arith.constant 0 : index
    %c8_108 = arith.constant 8 : index
    %264 = vector.load %arg17[%c0_107, %c8_108] : memref<8x40xf32, #tpu.memory_space<vmem>>, vector<8x8xf32>
    tpu.vector_store %arg17[%c0_107, %c8_108], %263 {strides = array<i32>} : memref<8x40xf32, #tpu.memory_space<vmem>>, vector<8x8xf32>,
    %c0_109 = arith.constant 0 : index
    %c6_110 = arith.constant 6 : index
    %265 = vector.load %arg18[%c0_109, %c6_110] : memref<8x15xf32, #tpu.memory_space<vmem>>, vector<8x1xf32>
    tpu.vector_store %arg18[%c0_109, %c6_110], %250 {strides = array<i32>} : memref<8x15xf32, #tpu.memory_space<vmem>>, vector<8x1xf32>,
    %c0_111 = arith.constant 0 : index
    %c11_112 = arith.constant 11 : index
    %266 = vector.load %arg18[%c0_111, %c11_112] : memref<8x15xf32, #tpu.memory_space<vmem>>, vector<8x1xf32>
    tpu.vector_store %arg18[%c0_111, %c11_112], %257 {strides = array<i32>} : memref<8x15xf32, #tpu.memory_space<vmem>>, vector<8x1xf32>,
    %267 = vector.extract_strided_slice %203 {offsets = [0, 2], sizes = [8, 1], strides = [1, 1]} : vector<8x5xf32> to vector<8x1xf32>
    %268 = vector.extract_strided_slice %207 {offsets = [2, 0], sizes = [1, 8], strides = [1, 1]} : vector<5x8xf32> to vector<1x8xf32>
    %269 = vector.broadcast %267 : vector<8x1xf32> to vector<8x8xf32>
    %270 = vector.broadcast %268 : vector<1x8xf32> to vector<8x8xf32>
    %271 = arith.addf %269, %270 : vector<8x8xf32>
    %cst_113 = arith.constant 0.000000e+00 : f32
    %272 = vector.broadcast %cst_113 : f32 to vector<8x8xf32>
    %273 = arith.cmpf oge, %271, %272 : vector<8x8xf32>
    %cst_114 = arith.constant 2.000000e-01 : f32
    %274 = vector.broadcast %cst_114 : f32 to vector<8x8xf32>
    %275 = arith.mulf %274, %271 : vector<8x8xf32>
    %276 = arith.select %273, %271, %275 : vector<8x8xi1>, vector<8x8xf32>
    %277 = arith.addf %276, %5 : vector<8x8xf32>
    %cst_115 = arith.constant dense<0xFF800000> : vector<8xf32>
    %278 = vector.multi_reduction <maximumf>, %277, %cst_115 [1] : vector<8x8xf32> to vector<8xf32>
    %279 = vector.shape_cast %278 : vector<8xf32> to vector<8x1xf32>
    %280 = vector.broadcast %279 : vector<8x1xf32> to vector<8x8xf32>
    %281 = arith.subf %277, %280 : vector<8x8xf32>
    %282 = math.exp %281 : vector<8x8xf32>
    %cst_116 = arith.constant dense<0.000000e+00> : vector<8xf32>
    %283 = vector.multi_reduction <add>, %282, %cst_116 [1] : vector<8x8xf32> to vector<8xf32>
    %284 = vector.shape_cast %283 : vector<8xf32> to vector<8x1xf32>
    %cst_117 = arith.constant 1.000000e+00 : f32
    %285 = vector.broadcast %cst_117 : f32 to vector<8x1xf32>
    %286 = arith.divf %285, %284 : vector<8x1xf32>
    %287 = vector.broadcast %286 : vector<8x1xf32> to vector<8x8xf32>
    %288 = arith.mulf %282, %287 : vector<8x8xf32>
    %289 = vector.extract_strided_slice %202 {offsets = [0, 16], sizes = [8, 8], strides = [1, 1]} : vector<8x40xf32> to vector<8x8xf32>
    %290 = arith.truncf %288 : vector<8x8xf32> to vector<8x8xbf16>
    %291 = arith.truncf %289 : vector<8x8xf32> to vector<8x8xbf16>
    %cst_118 = arith.constant dense<0.000000e+00> : vector<8x8xf32>
    %292 = tpu.matmul %290, %291, %cst_118 {dimension_numbers = #tpu.dot_dimension_numbers<[1], [0], [0], [1], [0, 0, 1, 1], [], []>} : vector<8x8xbf16>, vector<8x8xbf16>, vector<8x8xf32> -> vector<8x8xf32>
    %c0_119 = arith.constant 0 : index
    %c16_120 = arith.constant 16 : index
    %293 = vector.load %arg17[%c0_119, %c16_120] : memref<8x40xf32, #tpu.memory_space<vmem>>, vector<8x8xf32>
    tpu.vector_store %arg17[%c0_119, %c16_120], %292 {strides = array<i32>} : memref<8x40xf32, #tpu.memory_space<vmem>>, vector<8x8xf32>,
    %c0_121 = arith.constant 0 : index
    %c7_122 = arith.constant 7 : index
    %294 = vector.load %arg18[%c0_121, %c7_122] : memref<8x15xf32, #tpu.memory_space<vmem>>, vector<8x1xf32>
    tpu.vector_store %arg18[%c0_121, %c7_122], %279 {strides = array<i32>} : memref<8x15xf32, #tpu.memory_space<vmem>>, vector<8x1xf32>,
    %c0_123 = arith.constant 0 : index
    %c12_124 = arith.constant 12 : index
    %295 = vector.load %arg18[%c0_123, %c12_124] : memref<8x15xf32, #tpu.memory_space<vmem>>, vector<8x1xf32>
    tpu.vector_store %arg18[%c0_123, %c12_124], %286 {strides = array<i32>} : memref<8x15xf32, #tpu.memory_space<vmem>>, vector<8x1xf32>,
    %296 = vector.extract_strided_slice %203 {offsets = [0, 3], sizes = [8, 1], strides = [1, 1]} : vector<8x5xf32> to vector<8x1xf32>
    %297 = vector.extract_strided_slice %207 {offsets = [3, 0], sizes = [1, 8], strides = [1, 1]} : vector<5x8xf32> to vector<1x8xf32>
    %298 = vector.broadcast %296 : vector<8x1xf32> to vector<8x8xf32>
    %299 = vector.broadcast %297 : vector<1x8xf32> to vector<8x8xf32>
    %300 = arith.addf %298, %299 : vector<8x8xf32>
    %cst_125 = arith.constant 0.000000e+00 : f32
    %301 = vector.broadcast %cst_125 : f32 to vector<8x8xf32>
    %302 = arith.cmpf oge, %300, %301 : vector<8x8xf32>
    %cst_126 = arith.constant 2.000000e-01 : f32
    %303 = vector.broadcast %cst_126 : f32 to vector<8x8xf32>
    %304 = arith.mulf %303, %300 : vector<8x8xf32>
    %305 = arith.select %302, %300, %304 : vector<8x8xi1>, vector<8x8xf32>
    %306 = arith.addf %305, %5 : vector<8x8xf32>
    %cst_127 = arith.constant dense<0xFF800000> : vector<8xf32>
    %307 = vector.multi_reduction <maximumf>, %306, %cst_127 [1] : vector<8x8xf32> to vector<8xf32>
    %308 = vector.shape_cast %307 : vector<8xf32> to vector<8x1xf32>
    %309 = vector.broadcast %308 : vector<8x1xf32> to vector<8x8xf32>
    %310 = arith.subf %306, %309 : vector<8x8xf32>
    %311 = math.exp %310 : vector<8x8xf32>
    %cst_128 = arith.constant dense<0.000000e+00> : vector<8xf32>
    %312 = vector.multi_reduction <add>, %311, %cst_128 [1] : vector<8x8xf32> to vector<8xf32>
    %313 = vector.shape_cast %312 : vector<8xf32> to vector<8x1xf32>
    %cst_129 = arith.constant 1.000000e+00 : f32
    %314 = vector.broadcast %cst_129 : f32 to vector<8x1xf32>
    %315 = arith.divf %314, %313 : vector<8x1xf32>
    %316 = vector.broadcast %315 : vector<8x1xf32> to vector<8x8xf32>
    %317 = arith.mulf %311, %316 : vector<8x8xf32>
    %318 = vector.extract_strided_slice %202 {offsets = [0, 24], sizes = [8, 8], strides = [1, 1]} : vector<8x40xf32> to vector<8x8xf32>
    %319 = arith.truncf %317 : vector<8x8xf32> to vector<8x8xbf16>
    %320 = arith.truncf %318 : vector<8x8xf32> to vector<8x8xbf16>
    %cst_130 = arith.constant dense<0.000000e+00> : vector<8x8xf32>
    %321 = tpu.matmul %319, %320, %cst_130 {dimension_numbers = #tpu.dot_dimension_numbers<[1], [0], [0], [1], [0, 0, 1, 1], [], []>} : vector<8x8xbf16>, vector<8x8xbf16>, vector<8x8xf32> -> vector<8x8xf32>
    %c0_131 = arith.constant 0 : index
    %c24_132 = arith.constant 24 : index
    %322 = vector.load %arg17[%c0_131, %c24_132] : memref<8x40xf32, #tpu.memory_space<vmem>>, vector<8x8xf32>
    tpu.vector_store %arg17[%c0_131, %c24_132], %321 {strides = array<i32>} : memref<8x40xf32, #tpu.memory_space<vmem>>, vector<8x8xf32>,
    %c0_133 = arith.constant 0 : index
    %c8_134 = arith.constant 8 : index
    %323 = vector.load %arg18[%c0_133, %c8_134] : memref<8x15xf32, #tpu.memory_space<vmem>>, vector<8x1xf32>
    tpu.vector_store %arg18[%c0_133, %c8_134], %308 {strides = array<i32>} : memref<8x15xf32, #tpu.memory_space<vmem>>, vector<8x1xf32>,
    %c0_135 = arith.constant 0 : index
    %c13_136 = arith.constant 13 : index
    %324 = vector.load %arg18[%c0_135, %c13_136] : memref<8x15xf32, #tpu.memory_space<vmem>>, vector<8x1xf32>
    tpu.vector_store %arg18[%c0_135, %c13_136], %315 {strides = array<i32>} : memref<8x15xf32, #tpu.memory_space<vmem>>, vector<8x1xf32>,
    %325 = vector.extract_strided_slice %203 {offsets = [0, 4], sizes = [8, 1], strides = [1, 1]} : vector<8x5xf32> to vector<8x1xf32>
    %326 = vector.extract_strided_slice %207 {offsets = [4, 0], sizes = [1, 8], strides = [1, 1]} : vector<5x8xf32> to vector<1x8xf32>
    %327 = vector.broadcast %325 : vector<8x1xf32> to vector<8x8xf32>
    %328 = vector.broadcast %326 : vector<1x8xf32> to vector<8x8xf32>
    %329 = arith.addf %327, %328 : vector<8x8xf32>
    %cst_137 = arith.constant 0.000000e+00 : f32
    %330 = vector.broadcast %cst_137 : f32 to vector<8x8xf32>
    %331 = arith.cmpf oge, %329, %330 : vector<8x8xf32>
    %cst_138 = arith.constant 2.000000e-01 : f32
    %332 = vector.broadcast %cst_138 : f32 to vector<8x8xf32>
    %333 = arith.mulf %332, %329 : vector<8x8xf32>
    %334 = arith.select %331, %329, %333 : vector<8x8xi1>, vector<8x8xf32>
    %335 = arith.addf %334, %5 : vector<8x8xf32>
    %cst_139 = arith.constant dense<0xFF800000> : vector<8xf32>
    %336 = vector.multi_reduction <maximumf>, %335, %cst_139 [1] : vector<8x8xf32> to vector<8xf32>
    %337 = vector.shape_cast %336 : vector<8xf32> to vector<8x1xf32>
    %338 = vector.broadcast %337 : vector<8x1xf32> to vector<8x8xf32>
    %339 = arith.subf %335, %338 : vector<8x8xf32>
    %340 = math.exp %339 : vector<8x8xf32>
    %cst_140 = arith.constant dense<0.000000e+00> : vector<8xf32>
    %341 = vector.multi_reduction <add>, %340, %cst_140 [1] : vector<8x8xf32> to vector<8xf32>
    %342 = vector.shape_cast %341 : vector<8xf32> to vector<8x1xf32>
    %cst_141 = arith.constant 1.000000e+00 : f32
    %343 = vector.broadcast %cst_141 : f32 to vector<8x1xf32>
    %344 = arith.divf %343, %342 : vector<8x1xf32>
    %345 = vector.broadcast %344 : vector<8x1xf32> to vector<8x8xf32>
    %346 = arith.mulf %340, %345 : vector<8x8xf32>
    %347 = vector.extract_strided_slice %202 {offsets = [0, 32], sizes = [8, 8], strides = [1, 1]} : vector<8x40xf32> to vector<8x8xf32>
    %348 = arith.truncf %346 : vector<8x8xf32> to vector<8x8xbf16>
    %349 = arith.truncf %347 : vector<8x8xf32> to vector<8x8xbf16>
    %cst_142 = arith.constant dense<0.000000e+00> : vector<8x8xf32>
    %350 = tpu.matmul %348, %349, %cst_142 {dimension_numbers = #tpu.dot_dimension_numbers<[1], [0], [0], [1], [0, 0, 1, 1], [], []>} : vector<8x8xbf16>, vector<8x8xbf16>, vector<8x8xf32> -> vector<8x8xf32>
    %c0_143 = arith.constant 0 : index
    %c32_144 = arith.constant 32 : index
    %351 = vector.load %arg17[%c0_143, %c32_144] : memref<8x40xf32, #tpu.memory_space<vmem>>, vector<8x8xf32>
    tpu.vector_store %arg17[%c0_143, %c32_144], %350 {strides = array<i32>} : memref<8x40xf32, #tpu.memory_space<vmem>>, vector<8x8xf32>,
    %c0_145 = arith.constant 0 : index
    %c9_146 = arith.constant 9 : index
    %352 = vector.load %arg18[%c0_145, %c9_146] : memref<8x15xf32, #tpu.memory_space<vmem>>, vector<8x1xf32>
    tpu.vector_store %arg18[%c0_145, %c9_146], %337 {strides = array<i32>} : memref<8x15xf32, #tpu.memory_space<vmem>>, vector<8x1xf32>,
    %c0_147 = arith.constant 0 : index
    %c14_148 = arith.constant 14 : index
    %353 = vector.load %arg18[%c0_147, %c14_148] : memref<8x15xf32, #tpu.memory_space<vmem>>, vector<8x1xf32>
    tpu.vector_store %arg18[%c0_147, %c14_148], %344 {strides = array<i32>} : memref<8x15xf32, #tpu.memory_space<vmem>>, vector<8x1xf32>,
    %c0_149 = arith.constant 0 : index
    %c0_150 = arith.constant 0 : index
    %354 = vector.load %arg18[%c0_149, %c0_150] : memref<8x15xf32, #tpu.memory_space<vmem>>, vector<8x15xf32>
    %cst_151 = arith.constant dense<0.000000e+00> : vector<24x15xf32>
    %355 = tpu.matmul %7, %354, %cst_151 {dimension_numbers = #tpu.dot_dimension_numbers<[1], [0], [0], [1], [0, 0, 1, 1], [], []>} : vector<24x8xf32>, vector<8x15xf32>, vector<24x15xf32> -> vector<24x15xf32>
    %cst_152 = arith.constant dense<0.000000e+00> : vector<24x5xf32>
    %356 = tpu.matmul %9, %207, %cst_152 {dimension_numbers = #tpu.dot_dimension_numbers<[1], [1], [0], [0], [0, 0, 1, 0], [], []>} : vector<24x8xf32>, vector<5x8xf32>, vector<24x5xf32> -> vector<24x5xf32>
    %357 = vector.extract_strided_slice %355 {offsets = [0, 0], sizes = [24, 5], strides = [1, 1]} : vector<24x15xf32> to vector<24x5xf32>
    %358 = arith.addf %357, %356 : vector<24x5xf32>
    %cst_153 = arith.constant 0.000000e+00 : f32
    %359 = vector.broadcast %cst_153 : f32 to vector<24x5xf32>
    %360 = arith.cmpf oge, %358, %359 : vector<24x5xf32>
    %cst_154 = arith.constant 2.000000e-01 : f32
    %361 = vector.broadcast %cst_154 : f32 to vector<24x5xf32>
    %362 = arith.mulf %361, %358 : vector<24x5xf32>
    %363 = arith.select %360, %358, %362 : vector<24x5xi1>, vector<24x5xf32>
    %364 = vector.extract_strided_slice %355 {offsets = [0, 5], sizes = [24, 5], strides = [1, 1]} : vector<24x15xf32> to vector<24x5xf32>
    %365 = arith.subf %363, %364 : vector<24x5xf32>
    %366 = math.exp %365 : vector<24x5xf32>
    %367 = vector.extract_strided_slice %355 {offsets = [0, 10], sizes = [24, 5], strides = [1, 1]} : vector<24x15xf32> to vector<24x5xf32>
    %368 = arith.mulf %366, %367 : vector<24x5xf32>
    %c0_155 = arith.constant 0 : index
    %c5_156 = arith.constant 5 : index
    %369 = vector.load %arg16[%c0_155, %c5_156] : memref<24x10xf32, #tpu.memory_space<vmem>>, vector<24x5xf32>
    tpu.vector_store %arg16[%c0_155, %c5_156], %368 {strides = array<i32>} : memref<24x10xf32, #tpu.memory_space<vmem>>, vector<24x5xf32>,
    %c0_157 = arith.constant 0 : index
    %c0_158 = arith.constant 0 : index
    %370 = vector.load %arg17[%c0_157, %c0_158] : memref<8x40xf32, #tpu.memory_space<vmem>>, vector<8x40xf32>
    %c0_159 = arith.constant 0 : index
    %c0_160 = arith.constant 0 : index
    %371 = vector.load %arg9[%c0_159, %c0_160] : memref<3x40xf32, #tpu.memory_space<vmem>>, vector<1x40xf32>
    %372 = vector.broadcast %371 : vector<1x40xf32> to vector<8x40xf32>
    %373 = arith.addf %370, %372 : vector<8x40xf32>
    %cst_161 = arith.constant 0.000000e+00 : f32
    %374 = vector.broadcast %cst_161 : f32 to vector<8x40xf32>
    %375 = arith.cmpf oge, %373, %374 : vector<8x40xf32>
    %cst_162 = arith.constant 0.00999999977 : f32
    %376 = vector.broadcast %cst_162 : f32 to vector<8x40xf32>
    %377 = arith.mulf %376, %373 : vector<8x40xf32>
    %378 = arith.select %375, %373, %377 : vector<8x40xi1>, vector<8x40xf32>
    %c1_163 = arith.constant 1 : index
    %c0_164 = arith.constant 0 : index
    %379 = vector.load %arg9[%c1_163, %c0_164] : memref<3x40xf32, #tpu.memory_space<vmem>>, vector<1x40xf32>
    %380 = vector.broadcast %379 : vector<1x40xf32> to vector<8x40xf32>
    %381 = arith.mulf %378, %380 : vector<8x40xf32>
    %c2_165 = arith.constant 2 : index
    %c0_166 = arith.constant 0 : index
    %382 = vector.load %arg9[%c2_165, %c0_166] : memref<3x40xf32, #tpu.memory_space<vmem>>, vector<1x40xf32>
    %383 = vector.broadcast %382 : vector<1x40xf32> to vector<8x40xf32>
    %384 = arith.addf %381, %383 : vector<8x40xf32>
    %c0_167 = arith.constant 0 : index
    %c0_168 = arith.constant 0 : index
    %385 = vector.load %arg10[%c0_167, %c0_168] : memref<40x40xf32, #tpu.memory_space<vmem>>, vector<40x40xf32>
    %386 = arith.truncf %384 : vector<8x40xf32> to vector<8x40xbf16>
    %387 = arith.truncf %385 : vector<40x40xf32> to vector<40x40xbf16>
    %cst_169 = arith.constant dense<0.000000e+00> : vector<8x40xf32>
    %388 = tpu.matmul %386, %387, %cst_169 {dimension_numbers = #tpu.dot_dimension_numbers<[1], [0], [0], [1], [0, 0, 1, 1], [], []>} : vector<8x40xbf16>, vector<40x40xbf16>, vector<8x40xf32> -> vector<8x40xf32>
    %c0_170 = arith.constant 0 : index
    %c0_171 = arith.constant 0 : index
    %389 = vector.load %arg12[%c0_170, %c0_171] : memref<4x40xf32, #tpu.memory_space<vmem>>, vector<1x40xf32>
    %390 = vector.broadcast %389 : vector<1x40xf32> to vector<8x40xf32>
    %391 = arith.addf %388, %390 : vector<8x40xf32>
    %cst_172 = arith.constant 0.000000e+00 : f32
    %392 = vector.broadcast %cst_172 : f32 to vector<8x40xf32>
    %393 = arith.cmpf oge, %391, %392 : vector<8x40xf32>
    %cst_173 = arith.constant 0.00999999977 : f32
    %394 = vector.broadcast %cst_173 : f32 to vector<8x40xf32>
    %395 = arith.mulf %394, %391 : vector<8x40xf32>
    %396 = arith.select %393, %391, %395 : vector<8x40xi1>, vector<8x40xf32>
    %c0_174 = arith.constant 0 : index
    %c0_175 = arith.constant 0 : index
    %397 = vector.load %arg14[%c0_174, %c0_175] : memref<8x40xf32, #tpu.memory_space<vmem>>, vector<8x40xf32>
    tpu.vector_store %arg14[%c0_174, %c0_175], %396 {strides = array<i32>} : memref<8x40xf32, #tpu.memory_space<vmem>>, vector<8x40xf32>,
    %c0_176 = arith.constant 0 : index
    %c0_177 = arith.constant 0 : index
    %398 = vector.load %arg3[%c0_176, %c0_177] : memref<2x8xf32, #tpu.memory_space<vmem>>, vector<2x8xf32>
    %399 = arith.truncf %398 : vector<2x8xf32> to vector<2x8xbf16>
    %400 = arith.truncf %396 : vector<8x40xf32> to vector<8x40xbf16>
    %cst_178 = arith.constant dense<0.000000e+00> : vector<2x40xf32>
    %401 = tpu.matmul %399, %400, %cst_178 {dimension_numbers = #tpu.dot_dimension_numbers<[1], [0], [0], [1], [0, 0, 1, 1], [], []>} : vector<2x8xbf16>, vector<8x40xbf16>, vector<2x40xf32> -> vector<2x40xf32>
    %c0_179 = arith.constant 0 : index
    %c0_180 = arith.constant 0 : index
    %402 = vector.load %arg11[%c0_179, %c0_180] : memref<40x40xf32, #tpu.memory_space<vmem>>, vector<40x40xf32>
    %403 = arith.truncf %401 : vector<2x40xf32> to vector<2x40xbf16>
    %404 = arith.truncf %402 : vector<40x40xf32> to vector<40x40xbf16>
    %cst_181 = arith.constant dense<0.000000e+00> : vector<2x40xf32>
    %405 = tpu.matmul %403, %404, %cst_181 {dimension_numbers = #tpu.dot_dimension_numbers<[1], [0], [0], [1], [0, 0, 1, 1], [], []>} : vector<2x40xbf16>, vector<40x40xbf16>, vector<2x40xf32> -> vector<2x40xf32>
    %c1_182 = arith.constant 1 : index
    %c0_183 = arith.constant 0 : index
    %406 = vector.load %arg12[%c1_182, %c0_183] : memref<4x40xf32, #tpu.memory_space<vmem>>, vector<1x40xf32>
    %407 = vector.broadcast %406 : vector<1x40xf32> to vector<2x40xf32>
    %408 = arith.addf %405, %407 : vector<2x40xf32>
    %cst_184 = arith.constant 0.000000e+00 : f32
    %409 = vector.broadcast %cst_184 : f32 to vector<2x40xf32>
    %410 = arith.maximumf %408, %409 : vector<2x40xf32>
    %c2_185 = arith.constant 2 : index
    %c0_186 = arith.constant 0 : index
    %411 = vector.load %arg12[%c2_185, %c0_186] : memref<4x40xf32, #tpu.memory_space<vmem>>, vector<1x40xf32>
    %412 = vector.broadcast %411 : vector<1x40xf32> to vector<2x40xf32>
    %413 = arith.mulf %410, %412 : vector<2x40xf32>
    %c3 = arith.constant 3 : index
    %c0_187 = arith.constant 0 : index
    %414 = vector.load %arg12[%c3, %c0_187] : memref<4x40xf32, #tpu.memory_space<vmem>>, vector<1x40xf32>
    %415 = vector.broadcast %414 : vector<1x40xf32> to vector<2x40xf32>
    %416 = arith.addf %413, %415 : vector<2x40xf32>
    %c0_188 = arith.constant 0 : index
    %c0_189 = arith.constant 0 : index
    %417 = vector.load %arg13[%c0_188, %c0_189] : memref<41x3xf32, #tpu.memory_space<vmem>>, vector<40x3xf32>
    %418 = arith.truncf %416 : vector<2x40xf32> to vector<2x40xbf16>
    %419 = arith.truncf %417 : vector<40x3xf32> to vector<40x3xbf16>
    %cst_190 = arith.constant dense<0.000000e+00> : vector<2x3xf32>
    %420 = tpu.matmul %418, %419, %cst_190 {dimension_numbers = #tpu.dot_dimension_numbers<[1], [0], [0], [1], [0, 0, 1, 1], [], []>} : vector<2x40xbf16>, vector<40x3xbf16>, vector<2x3xf32> -> vector<2x3xf32>
    %c40 = arith.constant 40 : index
    %c0_191 = arith.constant 0 : index
    %421 = vector.load %arg13[%c40, %c0_191] : memref<41x3xf32, #tpu.memory_space<vmem>>, vector<1x3xf32>
    %422 = vector.broadcast %421 : vector<1x3xf32> to vector<2x3xf32>
    %423 = arith.addf %420, %422 : vector<2x3xf32>
    %c0_192 = arith.constant 0 : index
    %c0_193 = arith.constant 0 : index
    %424 = vector.load %arg15[%c0_192, %c0_193] : memref<2x3xf32, #tpu.memory_space<vmem>>, vector<2x3xf32>
    tpu.vector_store %arg15[%c0_192, %c0_193], %423 {strides = array<i32>} : memref<2x3xf32, #tpu.memory_space<vmem>>, vector<2x3xf32>,
    return
  }
}

</mosaic_0001>

<llo_original>
// kernel: tpu_custom_call.1
$region0: #{tpu_custom_call.1}
  #allocation0 [shape = 'u32[]', space=smem, size = 0x4, offset = 0x4, fixed_abs, tag = 'smem constant byte address 0x4 - core index']
  #allocation1 [shape = 'u32[144,128]{1,0:T(1,128)}', space=vmem, size = 0x12000, scoped, tag = 'internal scratch']
  #allocation2 [shape = 'f32[8,40]{1,0:T(8,128)}', space=vmem, size = 0x1000, scoped, tag = 'scratch operand']
  #allocation3 [shape = 'f32[8,15]{1,0:T(8,128)}', space=vmem, size = 0x1000, scoped, tag = 'scratch operand']
  %s0 = inlined_call_operand.hbm [shape: f32[8,16], index: 0, kind: input, shape index: {}]
  %s1 = inlined_call_operand.vmem [shape: s8[8,8], index: 1, kind: input, shape index: {}]
  %s2 = inlined_call_operand.vmem [shape: f32[2,24,8], index: 2, kind: input, shape index: {}]
  %s3 = inlined_call_operand.hbm [shape: f32[2,8], index: 3, kind: input, shape index: {}]
  %s4 = inlined_call_operand.hbm [shape: f32[16,45], index: 4, kind: input, shape index: {}]
  %s5 = inlined_call_operand.vmem [shape: f32[5,16], index: 5, kind: input, shape index: {}]
  %s6 = inlined_call_operand.hbm [shape: f32[3,40], index: 6, kind: input, shape index: {}]
  %s7 = inlined_call_operand.vmem [shape: f32[40,45], index: 7, kind: input, shape index: {}]
  %s8 = inlined_call_operand.vmem [shape: f32[5,40], index: 8, kind: input, shape index: {}]
  %s9 = inlined_call_operand.vmem [shape: f32[3,40], index: 9, kind: input, shape index: {}]
  %s10 = inlined_call_operand.vmem [shape: f32[40,40], index: 10, kind: input, shape index: {}]
  %s11 = inlined_call_operand.vmem [shape: f32[40,40], index: 11, kind: input, shape index: {}]
  %s12 = inlined_call_operand.vmem [shape: f32[4,40], index: 12, kind: input, shape index: {}]
  %s13 = inlined_call_operand.vmem [shape: f32[41,3], index: 13, kind: input, shape index: {}]
  %s14 = inlined_call_operand.hbm [shape: f32[8,40], index: 14, kind: output, shape index: {0}]
  %s15 = inlined_call_operand.hbm [shape: f32[2,3], index: 15, kind: output, shape index: {1}]
  %s16 = inlined_call_operand.vmem [shape: f32[24,10], index: 16, kind: output, shape index: {2}]
  %17 = xla_tuple %s14, %s15, %s16
  %s18 = sld [smem:[#allocation0]]
  $region98: #{tpu_custom_call.1} parent=0
    _
  %s20 = ssub.s32 1, %s18
  %s21 = scalar_select 0, %s20, %s18
  $region1: #{tpu_custom_call.1} parent=0
    #allocation4 [shape = 'u8[4096]{0}', space=vmem, size = 0x1000, scoped, tag = 'input window, operand 0, single buffered']
    #allocation5 [shape = 's32[1]{0}', space=sflag, size = 0x4, scoped, tag = 'scoped memory for tpu_custom_call.1']
    #allocation6 [shape = 's32[1]{0}', space=sflag, size = 0x4, scoped, tag = 'scoped memory for tpu_custom_call.1']
    #allocation7 [shape = 'u8[1024]{0}', space=vmem, size = 0x400, scoped, tag = 'input window, operand 3, single buffered']
    #allocation8 [shape = 's32[1]{0}', space=sflag, size = 0x4, scoped, tag = 'scoped memory for tpu_custom_call.1']
    #allocation9 [shape = 'u8[8192]{0}', space=vmem, size = 0x2000, scoped, tag = 'input window, operand 4, single buffered']
    #allocation10 [shape = 'u8[2048]{0}', space=vmem, size = 0x800, scoped, tag = 'input window, operand 6, single buffered']
    #allocation11 [shape = 's32[1]{0}', space=sflag, size = 0x4, scoped, tag = 'scoped memory for tpu_custom_call.1']
    #allocation12 [shape = 'u8[4096]{0}', space=vmem, size = 0x1000, scoped, tag = 'output window, operand 0, single buffered']
    #allocation13 [shape = 'u8[1024]{0}', space=vmem, size = 0x400, scoped, tag = 'output window, operand 1, single buffered']
    #allocation14 [shape = 's32[1]{0}', space=sflag, size = 0x4, scoped, tag = 'scoped memory for tpu_custom_call.1']
    %22 = vsyncpa [#allocation5], 0
    %23 = vsyncpa [#allocation8], 0
    %24 = vsyncpa [#allocation11], 0
    %25 = vsyncpa [#allocation6], 0
    %26 = vsyncpa [#allocation14], 0
    // Predicated region
    $region2: #{tpu_custom_call.1} parent=1 // pred_check
      _
    $region3: #{tpu_custom_call.1} parent=1 // pred_check_branch
      %28 = sbr.rel (0) target = $region5
    $region4: #{tpu_custom_call.1} parent=1 // pred_region
      %s30 = ssub.s32 128, 128
      %31 = vsyncadd [#allocation5], %s30
      %s33 = sshll.u32 [#allocation4], 4
      %s34 = int_to_ptr.vmem [resolvable:$true] %s33
      %36 = dma.hbm_to_vmem [thread:$0]  %s0, 128, %s34, [#allocation5]
    $region5: #{tpu_custom_call.1} parent=1 // pred_fallthru
      _
    // Predicated region
    $region6: #{tpu_custom_call.1} parent=1 // pred_check
      _
    $region7: #{tpu_custom_call.1} parent=1 // pred_check_branch
      %38 = sbr.rel (0) target = $region9
    $region8: #{tpu_custom_call.1} parent=1 // pred_region
      _
    $region9: #{tpu_custom_call.1} parent=1 // pred_fallthru
      _
    // Predicated region
    $region10: #{tpu_custom_call.1} parent=1 // pred_check
      _
    $region11: #{tpu_custom_call.1} parent=1 // pred_check_branch
      %40 = sbr.rel (0) target = $region13
    $region12: #{tpu_custom_call.1} parent=1 // pred_region
      _
    $region13: #{tpu_custom_call.1} parent=1 // pred_fallthru
      _
    // Predicated region
    $region14: #{tpu_custom_call.1} parent=1 // pred_check
      _
    $region15: #{tpu_custom_call.1} parent=1 // pred_check_branch
      %42 = sbr.rel (0) target = $region17
    $region16: #{tpu_custom_call.1} parent=1 // pred_region
      %s44 = ssub.s32 32, 32
      %45 = vsyncadd [#allocation8], %s44
      %s47 = sshll.u32 [#allocation7], 4
      %s48 = int_to_ptr.vmem [resolvable:$true] %s47
      %50 = dma.hbm_to_vmem [thread:$0]  %s3, 32, %s48, [#allocation8]
    $region17: #{tpu_custom_call.1} parent=1 // pred_fallthru
      _
    // Predicated region
    $region18: #{tpu_custom_call.1} parent=1 // pred_check
      _
    $region19: #{tpu_custom_call.1} parent=1 // pred_check_branch
      %52 = sbr.rel (0) target = $region21
    $region20: #{tpu_custom_call.1} parent=1 // pred_region
      %s54 = ssub.s32 256, 256
      %55 = vsyncadd [#allocation8], %s54
      %s56 = sshll.u32 [#allocation9], 4
      %s57 = int_to_ptr.vmem [resolvable:$true] %s56
      %62 = dma.hbm_to_vmem [thread:$0]  %s4, 256, %s57, [#allocation8], 128, 128, 8
    $region21: #{tpu_custom_call.1} parent=1 // pred_fallthru
      _
    // Predicated region
    $region22: #{tpu_custom_call.1} parent=1 // pred_check
      _
    $region23: #{tpu_custom_call.1} parent=1 // pred_check_branch
      %64 = sbr.rel (0) target = $region25
    $region24: #{tpu_custom_call.1} parent=1 // pred_region
      _
    $region25: #{tpu_custom_call.1} parent=1 // pred_fallthru
      _
    // Predicated region
    $region26: #{tpu_custom_call.1} parent=1 // pred_check
      _
    $region27: #{tpu_custom_call.1} parent=1 // pred_check_branch
      %66 = sbr.rel (0) target = $region29
    $region28: #{tpu_custom_call.1} parent=1 // pred_region
      %s68 = ssub.s32 64, 64
      %69 = vsyncadd [#allocation11], %s68
      %s71 = sshll.u32 [#allocation10], 4
      %s72 = int_to_ptr.vmem [resolvable:$true] %s71
      %74 = dma.hbm_to_vmem [thread:$0]  %s6, 64, %s72, [#allocation11]
    $region29: #{tpu_custom_call.1} parent=1 // pred_fallthru
      _
    // Predicated region
    $region30: #{tpu_custom_call.1} parent=1 // pred_check
      _
    $region31: #{tpu_custom_call.1} parent=1 // pred_check_branch
      %76 = sbr.rel (0) target = $region33
    $region32: #{tpu_custom_call.1} parent=1 // pred_region
      _
    $region33: #{tpu_custom_call.1} parent=1 // pred_fallthru
      _
    // Predicated region
    $region34: #{tpu_custom_call.1} parent=1 // pred_check
      _
    $region35: #{tpu_custom_call.1} parent=1 // pred_check_branch
      %78 = sbr.rel (0) target = $region37
    $region36: #{tpu_custom_call.1} parent=1 // pred_region
      _
    $region37: #{tpu_custom_call.1} parent=1 // pred_fallthru
      _
    // Predicated region
    $region38: #{tpu_custom_call.1} parent=1 // pred_check
      _
    $region39: #{tpu_custom_call.1} parent=1 // pred_check_branch
      %80 = sbr.rel (0) target = $region41
    $region40: #{tpu_custom_call.1} parent=1 // pred_region
      _
    $region41: #{tpu_custom_call.1} parent=1 // pred_fallthru
      _
    // Predicated region
    $region42: #{tpu_custom_call.1} parent=1 // pred_check
      _
    $region43: #{tpu_custom_call.1} parent=1 // pred_check_branch
      %82 = sbr.rel (0) target = $region45
    $region44: #{tpu_custom_call.1} parent=1 // pred_region
      _
    $region45: #{tpu_custom_call.1} parent=1 // pred_fallthru
      _
    // Predicated region
    $region46: #{tpu_custom_call.1} parent=1 // pred_check
      _
    $region47: #{tpu_custom_call.1} parent=1 // pred_check_branch
      %84 = sbr.rel (0) target = $region49
    $region48: #{tpu_custom_call.1} parent=1 // pred_region
      _
    $region49: #{tpu_custom_call.1} parent=1 // pred_fallthru
      _
    // Predicated region
    $region50: #{tpu_custom_call.1} parent=1 // pred_check
      _
    $region51: #{tpu_custom_call.1} parent=1 // pred_check_branch
      %86 = sbr.rel (0) target = $region53
    $region52: #{tpu_custom_call.1} parent=1 // pred_region
      _
    $region53: #{tpu_custom_call.1} parent=1 // pred_fallthru
      _
    // Predicated region
    $region54: #{tpu_custom_call.1} parent=1 // pred_check
      _
    $region55: #{tpu_custom_call.1} parent=1 // pred_check_branch
      %88 = sbr.rel (0) target = $region57
    $region56: #{tpu_custom_call.1} parent=1 // pred_region
      _
    $region57: #{tpu_custom_call.1} parent=1 // pred_fallthru
      _
    // Predicated region
    $region58: #{tpu_custom_call.1} parent=1 // pred_check
      _
    $region59: #{tpu_custom_call.1} parent=1 // pred_check_branch
      %90 = sbr.rel (0) target = $region61
    $region60: #{tpu_custom_call.1} parent=1 // pred_region
      %91 = dma.done [#allocation5], 128
    $region61: #{tpu_custom_call.1} parent=1 // pred_fallthru
      _
    // Predicated region
    $region62: #{tpu_custom_call.1} parent=1 // pred_check
      _
    $region63: #{tpu_custom_call.1} parent=1 // pred_check_branch
      %93 = sbr.rel (0) target = $region65
    $region64: #{tpu_custom_call.1} parent=1 // pred_region
      %94 = dma.done [#allocation8], 32
    $region65: #{tpu_custom_call.1} parent=1 // pred_fallthru
      _
    // Predicated region
    $region66: #{tpu_custom_call.1} parent=1 // pred_check
      _
    $region67: #{tpu_custom_call.1} parent=1 // pred_check_branch
      %96 = sbr.rel (0) target = $region69
    $region68: #{tpu_custom_call.1} parent=1 // pred_region
      %97 = dma.done [#allocation8], 256
    $region69: #{tpu_custom_call.1} parent=1 // pred_fallthru
      _
    // Predicated region
    $region70: #{tpu_custom_call.1} parent=1 // pred_check
      _
    $region71: #{tpu_custom_call.1} parent=1 // pred_check_branch
      %99 = sbr.rel (0) target = $region73
    $region72: #{tpu_custom_call.1} parent=1 // pred_region
      %100 = dma.done [#allocation11], 64
    $region73: #{tpu_custom_call.1} parent=1 // pred_fallthru
      _
    %v102 = vld [vmem:[%s1] sm:$0x3]
    %v103 = vunpack.c.0.s8 %v102
    %v104 = vcvt.s32.f32 %v103
    %v105 = vsub.f32 %v104, 1.0
    %v106 = vmul.f32 %v105, 1e+30
    %v107 = vld [vmem:[%s2] sm:$0xff]
    %v108 = vld [vmem:[%s2 + $0x8] sm:$0xff]
    %v109 = vld [vmem:[%s2 + $0x10] sm:$0xff]
    %s110 = scalar_lea.vmem %s2, 24
    %v111 = vld [vmem:[%s110] sm:$0xff]
    %v112 = vld [vmem:[%s110 + $0x8] sm:$0xff]
    %v113 = vld [vmem:[%s110 + $0x10] sm:$0xff]
    %v114 = vld [vmem:[#allocation4] sm:$0xff]
    %v115 = vld [vmem:[#allocation9] sm:$0xff]
    %v116 = vld [vmem:[#allocation9 + $0x8] sm:$0xff]
    %v117 = vpack.c.bf16 %v114, %v114
    %v118 = vpack.c.bf16 %v116, %v115
    %vm119 = vcmask 130048
    %v121 = vsel %vm119, %v117, 0
    %123 = vmatprep.subr.bf16.mxu0 0
    %124 = vmatpush1.bf16.msra.mxu0 %v118
    %125 = vmatprep.subr.bf16.mxu0 0
    %126 = vmatpush1.bf16.msra.mxu0 0
    %127 = vmatprep.subr.bf16.mxu0 0
    %128 = vmatpush1.bf16.msra.mxu0 0
    %129 = vmatprep.subr.bf16.mxu0 0
    %130 = vmatpush1.bf16.msra.mxu0 0
    %131 = vmatprep.subr.bf16.mxu0 0
    %132 = vmatpush1.bf16.msra.mxu0 0
    %133 = vmatprep.subr.bf16.mxu0 0
    %134 = vmatpush1.bf16.msra.mxu0 0
    %135 = vmatprep.subr.bf16.mxu0 0
    %136 = vmatpush1.bf16.msra.mxu0 0
    %137 = vmatprep.subr.bf16.mxu0 0
    %138 = vmatpush1.bf16.msra.mxu0 0
    %139 = vmatprep.subr.bf16.mxu0 0
    %140 = vmatpush1.bf16.msra.mxu0 0
    %141 = vmatprep.subr.bf16.mxu0 0
    %142 = vmatpush1.bf16.msra.mxu0 0
    %143 = vmatprep.subr.bf16.mxu0 0
    %144 = vmatpush1.bf16.msra.mxu0 0
    %145 = vmatprep.subr.bf16.mxu0 0
    %146 = vmatpush1.bf16.msra.mxu0 0
    %147 = vmatprep.subr.bf16.mxu0 0
    %148 = vmatpush1.bf16.msra.mxu0 0
    %149 = vmatprep.subr.bf16.mxu0 0
    %150 = vmatpush1.bf16.msra.mxu0 0
    %151 = vmatprep.subr.bf16.mxu0 0
    %152 = vmatpush1.bf16.msra.mxu0 0
    %153 = vmatprep.subr.bf16.mxu0 0
    %154 = vmatpush1.bf16.msra.mxu0 0
    %155 = vmatprep.mubr.bf16.mxu0 0
    %156 = vmatmul.mubr.bf16.gmra.mrb[0].mxu0 %v121
    %v157 = vpop.f32.mrb[0].mxu0
    %v158 = vadd.f32 0.0, %v157
    %v159 = vpop.f32.mrb[0].mxu0
    %v160 = vpop.f32.mrb[0].mxu0
    %v161 = vpop.f32.mrb[0].mxu0
    %162 = vdwg.mxu0
    %v163 = vld [vmem:[%s5] sm:$0x1f]
    %v164 = vpack.c.bf16 %v163, %v163
    %v166 = vsel %vm119, %v164, 0
    %168 = vmatprep.subr.bf16.mxu0 0
    %169 = vmatpush1.bf16.xpose.msra.mxu0 %v121
    %170 = vmatprep.subr.bf16.mxu0 0
    %171 = vmatpush1.bf16.xpose.msra.mxu0 0
    %172 = vmatprep.subr.bf16.mxu0 0
    %173 = vmatpush1.bf16.xpose.msra.mxu0 0
    %174 = vmatprep.subr.bf16.mxu0 0
    %175 = vmatpush1.bf16.xpose.msra.mxu0 0
    %176 = vmatprep.subr.bf16.mxu0 0
    %177 = vmatpush1.bf16.xpose.msra.mxu0 0
    %178 = vmatprep.subr.bf16.mxu0 0
    %179 = vmatpush1.bf16.xpose.msra.mxu0 0
    %180 = vmatprep.subr.bf16.mxu0 0
    %181 = vmatpush1.bf16.xpose.msra.mxu0 0
    %182 = vmatprep.subr.bf16.mxu0 0
    %183 = vmatpush1.bf16.xpose.msra.mxu0 0
    %184 = vmatprep.subr.bf16.mxu0 0
    %185 = vmatpush1.bf16.xpose.msra.mxu0 0
    %186 = vmatprep.subr.bf16.mxu0 0
    %187 = vmatpush1.bf16.xpose.msra.mxu0 0
    %188 = vmatprep.subr.bf16.mxu0 0
    %189 = vmatpush1.bf16.xpose.msra.mxu0 0
    %190 = vmatprep.subr.bf16.mxu0 0
    %191 = vmatpush1.bf16.xpose.msra.mxu0 0
    %192 = vmatprep.subr.bf16.mxu0 0
    %193 = vmatpush1.bf16.xpose.msra.mxu0 0
    %194 = vmatprep.subr.bf16.mxu0 0
    %195 = vmatpush1.bf16.xpose.msra.mxu0 0
    %196 = vmatprep.subr.bf16.mxu0 0
    %197 = vmatpush1.bf16.xpose.msra.mxu0 0
    %198 = vmatprep.subr.bf16.mxu0 0
    %199 = vmatpush1.bf16.xpose.msra.mxu0 0
    %200 = vmatprep.mubr.bf16.mxu0 0
    %201 = vmatmul.mubr.bf16.gmra.mrb[0].mxu0 %v166
    %v202 = vpop.f32.mrb[0].mxu0
    %v203 = vadd.f32 0.0, %v202
    %v204 = vpop.f32.mrb[0].mxu0
    %v205 = vpop.f32.mrb[0].mxu0
    %v206 = vpop.f32.mrb[0].mxu0
    %207 = vdwg.mxu0
    %209 = vrot.lane.b32.xlu0 %v158, 88
    %v210 = vpop.permute.xlu0 %209
    %vm212 = vcmask 39936
    %213 = vst.msk [vmem:[#allocation3] sm:$0xff] %vm212, %v210
    %214 = vset.pattern.permute.xlu0 40
    %215 = vperm.xlu0 %214, %v158
    %v216 = vpop.permute.xlu0 %215
    %v218 = vlaneseq
    %v219 = vshrl.u32 %v218, 7
    %v220 = vsub.s32 0, %v219
    %v221 = vrot.slane %v203, %v220
    %v222 = vadd.f32 %v216, %v221
    %vm223 = vcmp.ge.f32.partialorder %v222, 0.0
    %v224 = vmul.f32 %v222, 0.2
    %v225 = vsel %vm223, %v222, %v224
    %v226 = vadd.f32 %v225, %v106
    %vm227 = vcmask 64512
    %v228 = vsel %vm227, %v226, -inf
    %229 = vmax.xlane.f32.xlu0 %v228
    %v230 = vpop.xlane.xlu0 %229
    %v231 = vsub.f32 %v226, %v230
    %v232 = vmul.f32 %v231, 1.442695
    %v233 = vpow.pop %v232
    %v234 = vsel %vm227, %v233, 0.0
    %235 = vadd.xlane.f32.xlu0 %v234
    %v236 = vpop.xlane.xlu0 %235
    %v237 = vrcp.pop %v236
    %v238 = vmul.f32 1.0, %v237
    %v239 = vmul.f32 %v233, %v238
    %v240 = vpack.c.bf16 %v239, %v239
    %v241 = vpack.c.bf16 %v158, %v158
    %v243 = vsel %vm227, %v240, 0
    %vm245 = vcmask 1043456
    %v247 = vsel %vm245, %v241, 0
    %249 = vmatprep.subr.bf16.mxu0 0
    %250 = vmatpush1.bf16.msra.mxu0 %v247
    %251 = vmatprep.subr.bf16.mxu0 0
    %252 = vmatpush1.bf16.msra.mxu0 0
    %253 = vmatprep.subr.bf16.mxu0 0
    %254 = vmatpush1.bf16.msra.mxu0 0
    %255 = vmatprep.subr.bf16.mxu0 0
    %256 = vmatpush1.bf16.msra.mxu0 0
    %257 = vmatprep.subr.bf16.mxu0 0
    %258 = vmatpush1.bf16.msra.mxu0 0
    %259 = vmatprep.subr.bf16.mxu0 0
    %260 = vmatpush1.bf16.msra.mxu0 0
    %261 = vmatprep.subr.bf16.mxu0 0
    %262 = vmatpush1.bf16.msra.mxu0 0
    %263 = vmatprep.subr.bf16.mxu0 0
    %264 = vmatpush1.bf16.msra.mxu0 0
    %265 = vmatprep.subr.bf16.mxu0 0
    %266 = vmatpush1.bf16.msra.mxu0 0
    %267 = vmatprep.subr.bf16.mxu0 0
    %268 = vmatpush1.bf16.msra.mxu0 0
    %269 = vmatprep.subr.bf16.mxu0 0
    %270 = vmatpush1.bf16.msra.mxu0 0
    %271 = vmatprep.subr.bf16.mxu0 0
    %272 = vmatpush1.bf16.msra.mxu0 0
    %273 = vmatprep.subr.bf16.mxu0 0
    %274 = vmatpush1.bf16.msra.mxu0 0
    %275 = vmatprep.subr.bf16.mxu0 0
    %276 = vmatpush1.bf16.msra.mxu0 0
    %277 = vmatprep.subr.bf16.mxu0 0
    %278 = vmatpush1.bf16.msra.mxu0 0
    %279 = vmatprep.subr.bf16.mxu0 0
    %280 = vmatpush1.bf16.msra.mxu0 0
    %281 = vmatprep.mubr.bf16.mxu0 0
    %282 = vmatmul.mubr.bf16.gmra.mrb[0].mxu0 %v243
    %v283 = vpop.f32.mrb[0].mxu0
    %v284 = vadd.f32 0.0, %v283
    %v285 = vpop.f32.mrb[0].mxu0
    %v286 = vpop.f32.mrb[0].mxu0
    %v287 = vpop.f32.mrb[0].mxu0
    %288 = vdwg.mxu0
    %289 = vst.msk [vmem:[#allocation2] sm:$0xff] %vm227, %v284
    %vm290 = vcmask 48168
    %291 = vst.msk [vmem:[#allocation3] sm:$0xff] %vm290, %v230
    %vm292 = vcmask 89168
    %293 = vst.msk [vmem:[#allocation3] sm:$0xff] %vm292, %v238
    %294 = vset.pattern.permute.xlu0 41
    %295 = vperm.xlu0 %294, %v158
    %v296 = vpop.permute.xlu0 %295
    %v298 = vlaneseq
    %v299 = vshrl.u32 %v298, 7
    %v300 = vsub.s32 1, %v299
    %v301 = vrot.slane %v203, %v300
    %v302 = vadd.f32 %v296, %v301
    %vm303 = vcmp.ge.f32.partialorder %v302, 0.0
    %v304 = vmul.f32 %v302, 0.2
    %v305 = vsel %vm303, %v302, %v304
    %v306 = vadd.f32 %v305, %v106
    %v307 = vsel %vm227, %v306, -inf
    %308 = vmax.xlane.f32.xlu0 %v307
    %v309 = vpop.xlane.xlu0 %308
    %v310 = vsub.f32 %v306, %v309
    %v311 = vmul.f32 %v310, 1.442695
    %v312 = vpow.pop %v311
    %v313 = vsel %vm227, %v312, 0.0
    %314 = vadd.xlane.f32.xlu0 %v313
    %v315 = vpop.xlane.xlu0 %314
    %v316 = vrcp.pop %v315
    %v317 = vmul.f32 1.0, %v316
    %v318 = vmul.f32 %v312, %v317
    %v319 = vpack.c.bf16 %v318, %v318
    %321 = vrot.lane.b32.xlu0 %v241, 120
    %v322 = vpop.permute.xlu0 %321
    %v324 = vsel %vm227, %v319, 0
    %v327 = vsel %vm245, %v322, 0
    %329 = vmatprep.subr.bf16.mxu0 0
    %330 = vmatpush1.bf16.msra.mxu0 %v327
    %331 = vmatprep.subr.bf16.mxu0 0
    %332 = vmatpush1.bf16.msra.mxu0 0
    %333 = vmatprep.subr.bf16.mxu0 0
    %334 = vmatpush1.bf16.msra.mxu0 0
    %335 = vmatprep.subr.bf16.mxu0 0
    %336 = vmatpush1.bf16.msra.mxu0 0
    %337 = vmatprep.subr.bf16.mxu0 0
    %338 = vmatpush1.bf16.msra.mxu0 0
    %339 = vmatprep.subr.bf16.mxu0 0
    %340 = vmatpush1.bf16.msra.mxu0 0
    %341 = vmatprep.subr.bf16.mxu0 0
    %342 = vmatpush1.bf16.msra.mxu0 0
    %343 = vmatprep.subr.bf16.mxu0 0
    %344 = vmatpush1.bf16.msra.mxu0 0
    %345 = vmatprep.subr.bf16.mxu0 0
    %346 = vmatpush1.bf16.msra.mxu0 0
    %347 = vmatprep.subr.bf16.mxu0 0
    %348 = vmatpush1.bf16.msra.mxu0 0
    %349 = vmatprep.subr.bf16.mxu0 0
    %350 = vmatpush1.bf16.msra.mxu0 0
    %351 = vmatprep.subr.bf16.mxu0 0
    %352 = vmatpush1.bf16.msra.mxu0 0
    %353 = vmatprep.subr.bf16.mxu0 0
    %354 = vmatpush1.bf16.msra.mxu0 0
    %355 = vmatprep.subr.bf16.mxu0 0
    %356 = vmatpush1.bf16.msra.mxu0 0
    %357 = vmatprep.subr.bf16.mxu0 0
    %358 = vmatpush1.bf16.msra.mxu0 0
    %359 = vmatprep.subr.bf16.mxu0 0
    %360 = vmatpush1.bf16.msra.mxu0 0
    %361 = vmatprep.mubr.bf16.mxu0 0
    %362 = vmatmul.mubr.bf16.gmra.mrb[0].mxu0 %v324
    %v363 = vpop.f32.mrb[0].mxu0
    %v364 = vadd.f32 0.0, %v363
    %v365 = vpop.f32.mrb[0].mxu0
    %v366 = vpop.f32.mrb[0].mxu0
    %v367 = vpop.f32.mrb[0].mxu0
    %368 = vdwg.mxu0
    %370 = vrot.lane.b32.xlu0 %v364, 8
    %v371 = vpop.permute.xlu0 %370
    %vm373 = vcmask 130112
    %374 = vst.msk [vmem:[#allocation2] sm:$0xff] %vm373, %v371
    %vm375 = vcmask 56368
    %376 = vst.msk [vmem:[#allocation3] sm:$0xff] %vm375, %v309
    %vm377 = vcmask 97368
    %378 = vst.msk [vmem:[#allocation3] sm:$0xff] %vm377, %v317
    %379 = vset.pattern.permute.xlu0 42
    %380 = vperm.xlu0 %379, %v158
    %v381 = vpop.permute.xlu0 %380
    %v383 = vlaneseq
    %v384 = vshrl.u32 %v383, 7
    %v385 = vsub.s32 2, %v384
    %v386 = vrot.slane %v203, %v385
    %v387 = vadd.f32 %v381, %v386
    %vm388 = vcmp.ge.f32.partialorder %v387, 0.0
    %v389 = vmul.f32 %v387, 0.2
    %v390 = vsel %vm388, %v387, %v389
    %v391 = vadd.f32 %v390, %v106
    %v392 = vsel %vm227, %v391, -inf
    %393 = vmax.xlane.f32.xlu0 %v392
    %v394 = vpop.xlane.xlu0 %393
    %v395 = vsub.f32 %v391, %v394
    %v396 = vmul.f32 %v395, 1.442695
    %v397 = vpow.pop %v396
    %v398 = vsel %vm227, %v397, 0.0
    %399 = vadd.xlane.f32.xlu0 %v398
    %v400 = vpop.xlane.xlu0 %399
    %v401 = vrcp.pop %v400
    %v402 = vmul.f32 1.0, %v401
    %v403 = vmul.f32 %v397, %v402
    %v404 = vpack.c.bf16 %v403, %v403
    %405 = vrot.lane.b32.xlu0 %v241, 112
    %v406 = vpop.permute.xlu0 %405
    %v408 = vsel %vm227, %v404, 0
    %v411 = vsel %vm245, %v406, 0
    %413 = vmatprep.subr.bf16.mxu0 0
    %414 = vmatpush1.bf16.msra.mxu0 %v411
    %415 = vmatprep.subr.bf16.mxu0 0
    %416 = vmatpush1.bf16.msra.mxu0 0
    %417 = vmatprep.subr.bf16.mxu0 0
    %418 = vmatpush1.bf16.msra.mxu0 0
    %419 = vmatprep.subr.bf16.mxu0 0
    %420 = vmatpush1.bf16.msra.mxu0 0
    %421 = vmatprep.subr.bf16.mxu0 0
    %422 = vmatpush1.bf16.msra.mxu0 0
    %423 = vmatprep.subr.bf16.mxu0 0
    %424 = vmatpush1.bf16.msra.mxu0 0
    %425 = vmatprep.subr.bf16.mxu0 0
    %426 = vmatpush1.bf16.msra.mxu0 0
    %427 = vmatprep.subr.bf16.mxu0 0
    %428 = vmatpush1.bf16.msra.mxu0 0
    %429 = vmatprep.subr.bf16.mxu0 0
    %430 = vmatpush1.bf16.msra.mxu0 0
    %431 = vmatprep.subr.bf16.mxu0 0
    %432 = vmatpush1.bf16.msra.mxu0 0
    %433 = vmatprep.subr.bf16.mxu0 0
    %434 = vmatpush1.bf16.msra.mxu0 0
    %435 = vmatprep.subr.bf16.mxu0 0
    %436 = vmatpush1.bf16.msra.mxu0 0
    %437 = vmatprep.subr.bf16.mxu0 0
    %438 = vmatpush1.bf16.msra.mxu0 0
    %439 = vmatprep.subr.bf16.mxu0 0
    %440 = vmatpush1.bf16.msra.mxu0 0
    %441 = vmatprep.subr.bf16.mxu0 0
    %442 = vmatpush1.bf16.msra.mxu0 0
    %443 = vmatprep.subr.bf16.mxu0 0
    %444 = vmatpush1.bf16.msra.mxu0 0
    %445 = vmatprep.mubr.bf16.mxu0 0
    %446 = vmatmul.mubr.bf16.gmra.mrb[0].mxu0 %v408
    %v447 = vpop.f32.mrb[0].mxu0
    %v448 = vadd.f32 0.0, %v447
    %v449 = vpop.f32.mrb[0].mxu0
    %v450 = vpop.f32.mrb[0].mxu0
    %v451 = vpop.f32.mrb[0].mxu0
    %452 = vdwg.mxu0
    %454 = vrot.lane.b32.xlu0 %v448, 16
    %v455 = vpop.permute.xlu0 %454
    %vm457 = vcmask 195712
    %458 = vst.msk [vmem:[#allocation2] sm:$0xff] %vm457, %v455
    %vm459 = vcmask 64568
    %460 = vst.msk [vmem:[#allocation3] sm:$0xff] %vm459, %v394
    %vm461 = vcmask 105568
    %462 = vst.msk [vmem:[#allocation3] sm:$0xff] %vm461, %v402
    %463 = vset.pattern.permute.xlu0 43
    %464 = vperm.xlu0 %463, %v158
    %v465 = vpop.permute.xlu0 %464
    %v467 = vlaneseq
    %v468 = vshrl.u32 %v467, 7
    %v469 = vsub.s32 3, %v468
    %v470 = vrot.slane %v203, %v469
    %v471 = vadd.f32 %v465, %v470
    %vm472 = vcmp.ge.f32.partialorder %v471, 0.0
    %v473 = vmul.f32 %v471, 0.2
    %v474 = vsel %vm472, %v471, %v473
    %v475 = vadd.f32 %v474, %v106
    %v476 = vsel %vm227, %v475, -inf
    %477 = vmax.xlane.f32.xlu0 %v476
    %v478 = vpop.xlane.xlu0 %477
    %v479 = vsub.f32 %v475, %v478
    %v480 = vmul.f32 %v479, 1.442695
    %v481 = vpow.pop %v480
    %v482 = vsel %vm227, %v481, 0.0
    %483 = vadd.xlane.f32.xlu0 %v482
    %v484 = vpop.xlane.xlu0 %483
    %v485 = vrcp.pop %v484
    %v486 = vmul.f32 1.0, %v485
    %v487 = vmul.f32 %v481, %v486
    %v488 = vpack.c.bf16 %v487, %v487
    %489 = vrot.lane.b32.xlu0 %v241, 104
    %v490 = vpop.permute.xlu0 %489
    %v492 = vsel %vm227, %v488, 0
    %v495 = vsel %vm245, %v490, 0
    %497 = vmatprep.subr.bf16.mxu0 0
    %498 = vmatpush1.bf16.msra.mxu0 %v495
    %499 = vmatprep.subr.bf16.mxu0 0
    %500 = vmatpush1.bf16.msra.mxu0 0
    %501 = vmatprep.subr.bf16.mxu0 0
    %502 = vmatpush1.bf16.msra.mxu0 0
    %503 = vmatprep.subr.bf16.mxu0 0
    %504 = vmatpush1.bf16.msra.mxu0 0
    %505 = vmatprep.subr.bf16.mxu0 0
    %506 = vmatpush1.bf16.msra.mxu0 0
    %507 = vmatprep.subr.bf16.mxu0 0
    %508 = vmatpush1.bf16.msra.mxu0 0
    %509 = vmatprep.subr.bf16.mxu0 0
    %510 = vmatpush1.bf16.msra.mxu0 0
    %511 = vmatprep.subr.bf16.mxu0 0
    %512 = vmatpush1.bf16.msra.mxu0 0
    %513 = vmatprep.subr.bf16.mxu0 0
    %514 = vmatpush1.bf16.msra.mxu0 0
    %515 = vmatprep.subr.bf16.mxu0 0
    %516 = vmatpush1.bf16.msra.mxu0 0
    %517 = vmatprep.subr.bf16.mxu0 0
    %518 = vmatpush1.bf16.msra.mxu0 0
    %519 = vmatprep.subr.bf16.mxu0 0
    %520 = vmatpush1.bf16.msra.mxu0 0
    %521 = vmatprep.subr.bf16.mxu0 0
    %522 = vmatpush1.bf16.msra.mxu0 0
    %523 = vmatprep.subr.bf16.mxu0 0
    %524 = vmatpush1.bf16.msra.mxu0 0
    %525 = vmatprep.subr.bf16.mxu0 0
    %526 = vmatpush1.bf16.msra.mxu0 0
    %527 = vmatprep.subr.bf16.mxu0 0
    %528 = vmatpush1.bf16.msra.mxu0 0
    %529 = vmatprep.mubr.bf16.mxu0 0
    %530 = vmatmul.mubr.bf16.gmra.mrb[0].mxu0 %v492
    %v531 = vpop.f32.mrb[0].mxu0
    %v532 = vadd.f32 0.0, %v531
    %v533 = vpop.f32.mrb[0].mxu0
    %v534 = vpop.f32.mrb[0].mxu0
    %v535 = vpop.f32.mrb[0].mxu0
    %536 = vdwg.mxu0
    %538 = vrot.lane.b32.xlu0 %v532, 24
    %v539 = vpop.permute.xlu0 %538
    %vm541 = vcmask 261312
    %542 = vst.msk [vmem:[#allocation2] sm:$0xff] %vm541, %v539
    %vm543 = vcmask 72768
    %544 = vst.msk [vmem:[#allocation3] sm:$0xff] %vm543, %v478
    %vm545 = vcmask 113768
    %546 = vst.msk [vmem:[#allocation3] sm:$0xff] %vm545, %v486
    %547 = vset.pattern.permute.xlu0 44
    %548 = vperm.xlu0 %547, %v158
    %v549 = vpop.permute.xlu0 %548
    %v551 = vlaneseq
    %v552 = vshrl.u32 %v551, 7
    %v553 = vsub.s32 4, %v552
    %v554 = vrot.slane %v203, %v553
    %v555 = vadd.f32 %v549, %v554
    %vm556 = vcmp.ge.f32.partialorder %v555, 0.0
    %v557 = vmul.f32 %v555, 0.2
    %v558 = vsel %vm556, %v555, %v557
    %v559 = vadd.f32 %v558, %v106
    %v560 = vsel %vm227, %v559, -inf
    %561 = vmax.xlane.f32.xlu0 %v560
    %v562 = vpop.xlane.xlu0 %561
    %v563 = vsub.f32 %v559, %v562
    %v564 = vmul.f32 %v563, 1.442695
    %v565 = vpow.pop %v564
    %v566 = vsel %vm227, %v565, 0.0
    %567 = vadd.xlane.f32.xlu0 %v566
    %v568 = vpop.xlane.xlu0 %567
    %v569 = vrcp.pop %v568
    %v570 = vmul.f32 1.0, %v569
    %v571 = vmul.f32 %v565, %v570
    %v572 = vpack.c.bf16 %v571, %v571
    %573 = vrot.lane.b32.xlu0 %v241, 96
    %v574 = vpop.permute.xlu0 %573
    %v576 = vsel %vm227, %v572, 0
    %v579 = vsel %vm245, %v574, 0
    %581 = vmatprep.subr.bf16.mxu0 0
    %582 = vmatpush1.bf16.msra.mxu0 %v579
    %583 = vmatprep.subr.bf16.mxu0 0
    %584 = vmatpush1.bf16.msra.mxu0 0
    %585 = vmatprep.subr.bf16.mxu0 0
    %586 = vmatpush1.bf16.msra.mxu0 0
    %587 = vmatprep.subr.bf16.mxu0 0
    %588 = vmatpush1.bf16.msra.mxu0 0
    %589 = vmatprep.subr.bf16.mxu0 0
    %590 = vmatpush1.bf16.msra.mxu0 0
    %591 = vmatprep.subr.bf16.mxu0 0
    %592 = vmatpush1.bf16.msra.mxu0 0
    %593 = vmatprep.subr.bf16.mxu0 0
    %594 = vmatpush1.bf16.msra.mxu0 0
    %595 = vmatprep.subr.bf16.mxu0 0
    %596 = vmatpush1.bf16.msra.mxu0 0
    %597 = vmatprep.subr.bf16.mxu0 0
    %598 = vmatpush1.bf16.msra.mxu0 0
    %599 = vmatprep.subr.bf16.mxu0 0
    %600 = vmatpush1.bf16.msra.mxu0 0
    %601 = vmatprep.subr.bf16.mxu0 0
    %602 = vmatpush1.bf16.msra.mxu0 0
    %603 = vmatprep.subr.bf16.mxu0 0
    %604 = vmatpush1.bf16.msra.mxu0 0
    %605 = vmatprep.subr.bf16.mxu0 0
    %606 = vmatpush1.bf16.msra.mxu0 0
    %607 = vmatprep.subr.bf16.mxu0 0
    %608 = vmatpush1.bf16.msra.mxu0 0
    %609 = vmatprep.subr.bf16.mxu0 0
    %610 = vmatpush1.bf16.msra.mxu0 0
    %611 = vmatprep.subr.bf16.mxu0 0
    %612 = vmatpush1.bf16.msra.mxu0 0
    %613 = vmatprep.mubr.bf16.mxu0 0
    %614 = vmatmul.mubr.bf16.gmra.mrb[0].mxu0 %v576
    %v615 = vpop.f32.mrb[0].mxu0
    %v616 = vadd.f32 0.0, %v615
    %v617 = vpop.f32.mrb[0].mxu0
    %v618 = vpop.f32.mrb[0].mxu0
    %v619 = vpop.f32.mrb[0].mxu0
    %620 = vdwg.mxu0
    %622 = vrot.lane.b32.xlu0 %v616, 32
    %v623 = vpop.permute.xlu0 %622
    %vm625 = vcmask 326912
    %626 = vst.msk [vmem:[#allocation2] sm:$0xff] %vm625, %v623
    %vm627 = vcmask 80968
    %628 = vst.msk [vmem:[#allocation3] sm:$0xff] %vm627, %v562
    %vm629 = vcmask 121968
    %630 = vst.msk [vmem:[#allocation3] sm:$0xff] %vm629, %v570
    %v631 = vld [vmem:[#allocation3] sm:$0xff]
    %v633 = vsel %vm227, %v107, 0
    %v636 = vsel %vm227, %v108, 0
    %v639 = vsel %vm227, %v109, 0
    %641 = vmatprep.subr.mxu0 0.0
    %642 = vmatpush1.msra.mxu0 %v631
    %643 = vmatprep.subr.mxu0 0.0
    %644 = vmatpush1.msra.mxu0 0.0
    %645 = vmatprep.subr.mxu0 0.0
    %646 = vmatpush1.msra.mxu0 0.0
    %647 = vmatprep.subr.mxu0 0.0
    %648 = vmatpush1.msra.mxu0 0.0
    %649 = vmatprep.subr.mxu0 0.0
    %650 = vmatpush1.msra.mxu0 0.0
    %651 = vmatprep.subr.mxu0 0.0
    %652 = vmatpush1.msra.mxu0 0.0
    %653 = vmatprep.subr.mxu0 0.0
    %654 = vmatpush1.msra.mxu0 0.0
    %655 = vmatprep.subr.mxu0 0.0
    %656 = vmatpush1.msra.mxu0 0.0
    %657 = vmatprep.subr.mxu0 0.0
    %658 = vmatpush1.msra.mxu0 0.0
    %659 = vmatprep.subr.mxu0 0.0
    %660 = vmatpush1.msra.mxu0 0.0
    %661 = vmatprep.subr.mxu0 0.0
    %662 = vmatpush1.msra.mxu0 0.0
    %663 = vmatprep.subr.mxu0 0.0
    %664 = vmatpush1.msra.mxu0 0.0
    %665 = vmatprep.subr.mxu0 0.0
    %666 = vmatpush1.msra.mxu0 0.0
    %667 = vmatprep.subr.mxu0 0.0
    %668 = vmatpush1.msra.mxu0 0.0
    %669 = vmatprep.subr.mxu0 0.0
    %670 = vmatpush1.msra.mxu0 0.0
    %671 = vmatprep.subr.mxu0 0.0
    %672 = vmatpush1.msra.mxu0 0.0
    %673 = vmatprep.subr.mxu0 0.0
    %674 = vmatpush1.msra.mxu0 0.0
    %675 = vmatprep.subr.mxu0 0.0
    %676 = vmatpush1.msra.mxu0 0.0
    %677 = vmatprep.subr.mxu0 0.0
    %678 = vmatpush1.msra.mxu0 0.0
    %679 = vmatprep.subr.mxu0 0.0
    %680 = vmatpush1.msra.mxu0 0.0
    %681 = vmatprep.subr.mxu0 0.0
    %682 = vmatpush1.msra.mxu0 0.0
    %683 = vmatprep.subr.mxu0 0.0
    %684 = vmatpush1.msra.mxu0 0.0
    %685 = vmatprep.subr.mxu0 0.0
    %686 = vmatpush1.msra.mxu0 0.0
    %687 = vmatprep.subr.mxu0 0.0
    %688 = vmatpush1.msra.mxu0 0.0
    %689 = vmatprep.subr.mxu0 0.0
    %690 = vmatpush1.msra.mxu0 0.0
    %691 = vmatprep.subr.mxu0 0.0
    %692 = vmatpush1.msra.mxu0 0.0
    %693 = vmatprep.subr.mxu0 0.0
    %694 = vmatpush1.msra.mxu0 0.0
    %695 = vmatprep.subr.mxu0 0.0
    %696 = vmatpush1.msra.mxu0 0.0
    %697 = vmatprep.subr.mxu0 0.0
    %698 = vmatpush1.msra.mxu0 0.0
    %699 = vmatprep.subr.mxu0 0.0
    %700 = vmatpush1.msra.mxu0 0.0
    %701 = vmatprep.subr.mxu0 0.0
    %702 = vmatpush1.msra.mxu0 0.0
    %703 = vmatprep.subr.mxu0 0.0
    %704 = vmatpush1.msra.mxu0 0.0
    %705 = vmatprep.mubr.f32.mxu0 0.0
    %706 = vmatmul.mubr.f32.gmra.mrb[0].mxu0 %v633
    %v707 = vpop.f32.mrb[0].mxu0
    %v708 = vadd.f32 0.0, %v707
    %v709 = vpop.f32.mrb[0].mxu0
    %710 = vmatprep.mubr.f32.mxu0 0.0
    %711 = vmatmul.mubr.f32.gmra.mrb[0].mxu0 %v636
    %v712 = vpop.f32.mrb[0].mxu0
    %v713 = vadd.f32 0.0, %v712
    %v714 = vpop.f32.mrb[0].mxu0
    %715 = vmatprep.mubr.f32.mxu0 0.0
    %716 = vmatmul.mubr.f32.gmra.mrb[0].mxu0 %v639
    %v717 = vpop.f32.mrb[0].mxu0
    %v718 = vadd.f32 0.0, %v717
    %v719 = vpop.f32.mrb[0].mxu0
    %720 = vdwg.mxu0
    %v722 = vsel %vm227, %v111, 0
    %v725 = vsel %vm227, %v112, 0
    %v728 = vsel %vm227, %v113, 0
    %v731 = vsel %vm227, %v203, 0
    %733 = vmatprep.subr.mxu0 0.0
    %734 = vmatpush1.xpose.msra.mxu0 %v731
    %735 = vmatprep.subr.mxu0 0.0
    %736 = vmatpush1.xpose.msra.mxu0 0.0
    %737 = vmatprep.subr.mxu0 0.0
    %738 = vmatpush1.xpose.msra.mxu0 0.0
    %739 = vmatprep.subr.mxu0 0.0
    %740 = vmatpush1.xpose.msra.mxu0 0.0
    %741 = vmatprep.subr.mxu0 0.0
    %742 = vmatpush1.xpose.msra.mxu0 0.0
    %743 = vmatprep.subr.mxu0 0.0
    %744 = vmatpush1.xpose.msra.mxu0 0.0
    %745 = vmatprep.subr.mxu0 0.0
    %746 = vmatpush1.xpose.msra.mxu0 0.0
    %747 = vmatprep.subr.mxu0 0.0
    %748 = vmatpush1.xpose.msra.mxu0 0.0
    %749 = vmatprep.subr.mxu0 0.0
    %750 = vmatpush1.xpose.msra.mxu0 0.0
    %751 = vmatprep.subr.mxu0 0.0
    %752 = vmatpush1.xpose.msra.mxu0 0.0
    %753 = vmatprep.subr.mxu0 0.0
    %754 = vmatpush1.xpose.msra.mxu0 0.0
    %755 = vmatprep.subr.mxu0 0.0
    %756 = vmatpush1.xpose.msra.mxu0 0.0
    %757 = vmatprep.subr.mxu0 0.0
    %758 = vmatpush1.xpose.msra.mxu0 0.0
    %759 = vmatprep.subr.mxu0 0.0
    %760 = vmatpush1.xpose.msra.mxu0 0.0
    %761 = vmatprep.subr.mxu0 0.0
    %762 = vmatpush1.xpose.msra.mxu0 0.0
    %763 = vmatprep.subr.mxu0 0.0
    %764 = vmatpush1.xpose.msra.mxu0 0.0
    %765 = vmatprep.subr.mxu0 0.0
    %766 = vmatpush1.xpose.msra.mxu0 0.0
    %767 = vmatprep.subr.mxu0 0.0
    %768 = vmatpush1.xpose.msra.mxu0 0.0
    %769 = vmatprep.subr.mxu0 0.0
    %770 = vmatpush1.xpose.msra.mxu0 0.0
    %771 = vmatprep.subr.mxu0 0.0
    %772 = vmatpush1.xpose.msra.mxu0 0.0
    %773 = vmatprep.subr.mxu0 0.0
    %774 = vmatpush1.xpose.msra.mxu0 0.0
    %775 = vmatprep.subr.mxu0 0.0
    %776 = vmatpush1.xpose.msra.mxu0 0.0
    %777 = vmatprep.subr.mxu0 0.0
    %778 = vmatpush1.xpose.msra.mxu0 0.0
    %779 = vmatprep.subr.mxu0 0.0
    %780 = vmatpush1.xpose.msra.mxu0 0.0
    %781 = vmatprep.subr.mxu0 0.0
    %782 = vmatpush1.xpose.msra.mxu0 0.0
    %783 = vmatprep.subr.mxu0 0.0
    %784 = vmatpush1.xpose.msra.mxu0 0.0
    %785 = vmatprep.subr.mxu0 0.0
    %786 = vmatpush1.xpose.msra.mxu0 0.0
    %787 = vmatprep.subr.mxu0 0.0
    %788 = vmatpush1.xpose.msra.mxu0 0.0
    %789 = vmatprep.subr.mxu0 0.0
    %790 = vmatpush1.xpose.msra.mxu0 0.0
    %791 = vmatprep.subr.mxu0 0.0
    %792 = vmatpush1.xpose.msra.mxu0 0.0
    %793 = vmatprep.subr.mxu0 0.0
    %794 = vmatpush1.xpose.msra.mxu0 0.0
    %795 = vmatprep.subr.mxu0 0.0
    %796 = vmatpush1.xpose.msra.mxu0 0.0
    %797 = vmatprep.mubr.f32.mxu0 0.0
    %798 = vmatmul.mubr.f32.gmra.mrb[0].mxu0 %v722
    %v799 = vpop.f32.mrb[0].mxu0
    %v800 = vadd.f32 0.0, %v799
    %v801 = vpop.f32.mrb[0].mxu0
    %802 = vmatprep.mubr.f32.mxu0 0.0
    %803 = vmatmul.mubr.f32.gmra.mrb[0].mxu0 %v725
    %v804 = vpop.f32.mrb[0].mxu0
    %v805 = vadd.f32 0.0, %v804
    %v806 = vpop.f32.mrb[0].mxu0
    %807 = vmatprep.mubr.f32.mxu0 0.0
    %808 = vmatmul.mubr.f32.gmra.mrb[0].mxu0 %v728
    %v809 = vpop.f32.mrb[0].mxu0
    %v810 = vadd.f32 0.0, %v809
    %v811 = vpop.f32.mrb[0].mxu0
    %812 = vdwg.mxu0
    %v813 = vadd.f32 %v708, %v800
    %v814 = vadd.f32 %v713, %v805
    %v815 = vadd.f32 %v718, %v810
    %vm816 = vcmp.ge.f32.partialorder %v813, 0.0
    %vm817 = vcmp.ge.f32.partialorder %v814, 0.0
    %vm818 = vcmp.ge.f32.partialorder %v815, 0.0
    %v819 = vmul.f32 %v813, 0.2
    %v820 = vmul.f32 %v814, 0.2
    %v821 = vmul.f32 %v815, 0.2
    %v822 = vsel %vm816, %v813, %v819
    %v823 = vsel %vm817, %v814, %v820
    %v824 = vsel %vm818, %v815, %v821
    %828 = vrot.lane.b32.xlu0 %v708, 123
    %v829 = vpop.permute.xlu0 %828
    %830 = vrot.lane.b32.xlu0 %v713, 123
    %v831 = vpop.permute.xlu0 %830
    %832 = vrot.lane.b32.xlu0 %v718, 123
    %v833 = vpop.permute.xlu0 %832
    %v837 = vsub.f32 %v822, %v829
    %v838 = vsub.f32 %v823, %v831
    %v839 = vsub.f32 %v824, %v833
    %v840 = vmul.f32 %v837, 1.442695
    %v841 = vpow.pop %v840
    %v842 = vmul.f32 %v838, 1.442695
    %v843 = vpow.pop %v842
    %v844 = vmul.f32 %v839, 1.442695
    %v845 = vpow.pop %v844
    %846 = vrot.lane.b32.xlu0 %v708, 118
    %v847 = vpop.permute.xlu0 %846
    %848 = vrot.lane.b32.xlu0 %v713, 118
    %v849 = vpop.permute.xlu0 %848
    %850 = vrot.lane.b32.xlu0 %v718, 118
    %v851 = vpop.permute.xlu0 %850
    %v855 = vmul.f32 %v841, %v847
    %v856 = vmul.f32 %v843, %v849
    %v857 = vmul.f32 %v845, %v851
    %858 = vst.msk [vmem:[%s16] sm:$0xff] %vm212, %v855
    %859 = vst.msk [vmem:[%s16 + $0x8] sm:$0xff] %vm212, %v856
    %860 = vst.msk [vmem:[%s16 + $0x10] sm:$0xff] %vm212, %v857
    %v861 = vld [vmem:[#allocation2] sm:$0xff]
    %v862 = vld [vmem:[#allocation10] sm:$0x1]
    %v863 = vlaneseq
    %v864 = vshrl.u32 %v863, 7
    %v865 = vsub.s32 0, %v864
    %v866 = vrot.slane %v862, %v865
    %v867 = vadd.f32 %v861, %v866
    %vm868 = vcmp.ge.f32.partialorder %v867, 0.0
    %v869 = vmul.f32 %v867, 0.01
    %v870 = vsel %vm868, %v867, %v869
    %v871 = vld [vmem:[#allocation10 + $0x1] sm:$0x1]
    %v872 = vlaneseq
    %v873 = vshrl.u32 %v872, 7
    %v874 = vsub.s32 0, %v873
    %v875 = vrot.slane %v871, %v874
    %v876 = vmul.f32 %v870, %v875
    %v877 = vld [vmem:[#allocation10 + $0x2] sm:$0x1]
    %v878 = vlaneseq
    %v879 = vshrl.u32 %v878, 7
    %v880 = vsub.s32 0, %v879
    %v881 = vrot.slane %v877, %v880
    %v882 = vadd.f32 %v876, %v881
    %v883 = vld [vmem:[%s7] sm:$0xff]
    %v884 = vld [vmem:[%s7 + $0x8] sm:$0xff]
    %v885 = vld [vmem:[%s7 + $0x10] sm:$0xff]
    %v886 = vld [vmem:[%s7 + $0x18] sm:$0xff]
    %v887 = vld [vmem:[%s7 + $0x20] sm:$0xff]
    %v888 = vpack.c.bf16 %v882, %v882
    %v889 = vpack.c.bf16 %v884, %v883
    %v890 = vpack.c.bf16 %v886, %v885
    %v891 = vpack.c.bf16 %v887, %v887
    %vm892 = vcmask 326656
    %v894 = vsel %vm892, %v888, 0
    %v897 = vsel %vm245, %v891, 0
    %899 = vmatprep.subr.bf16.mxu0 0
    %900 = vmatpush1.bf16.msra.mxu0 %v889
    %901 = vmatprep.subr.bf16.mxu0 0
    %902 = vmatpush1.bf16.msra.mxu0 %v890
    %903 = vmatprep.subr.bf16.mxu0 0
    %904 = vmatpush1.bf16.msra.mxu0 %v897
    %905 = vmatprep.subr.bf16.mxu0 0
    %906 = vmatpush1.bf16.msra.mxu0 0
    %907 = vmatprep.subr.bf16.mxu0 0
    %908 = vmatpush1.bf16.msra.mxu0 0
    %909 = vmatprep.subr.bf16.mxu0 0
    %910 = vmatpush1.bf16.msra.mxu0 0
    %911 = vmatprep.subr.bf16.mxu0 0
    %912 = vmatpush1.bf16.msra.mxu0 0
    %913 = vmatprep.subr.bf16.mxu0 0
    %914 = vmatpush1.bf16.msra.mxu0 0
    %915 = vmatprep.subr.bf16.mxu0 0
    %916 = vmatpush1.bf16.msra.mxu0 0
    %917 = vmatprep.subr.bf16.mxu0 0
    %918 = vmatpush1.bf16.msra.mxu0 0
    %919 = vmatprep.subr.bf16.mxu0 0
    %920 = vmatpush1.bf16.msra.mxu0 0
    %921 = vmatprep.subr.bf16.mxu0 0
    %922 = vmatpush1.bf16.msra.mxu0 0
    %923 = vmatprep.subr.bf16.mxu0 0
    %924 = vmatpush1.bf16.msra.mxu0 0
    %925 = vmatprep.subr.bf16.mxu0 0
    %926 = vmatpush1.bf16.msra.mxu0 0
    %927 = vmatprep.subr.bf16.mxu0 0
    %928 = vmatpush1.bf16.msra.mxu0 0
    %929 = vmatprep.subr.bf16.mxu0 0
    %930 = vmatpush1.bf16.msra.mxu0 0
    %931 = vmatprep.mubr.bf16.mxu0 0
    %932 = vmatmul.mubr.bf16.gmra.mrb[0].mxu0 %v894
    %v933 = vpop.f32.mrb[0].mxu0
    %v934 = vadd.f32 0.0, %v933
    %v935 = vpop.f32.mrb[0].mxu0
    %v936 = vpop.f32.mrb[0].mxu0
    %v937 = vpop.f32.mrb[0].mxu0
    %938 = vdwg.mxu0
    %v939 = vld [vmem:[%s8] sm:$0x1f]
    %v940 = vpack.c.bf16 %v939, %v939
    %v942 = vsel %vm892, %v940, 0
    %944 = vmatprep.subr.bf16.mxu0 0
    %945 = vmatpush1.bf16.xpose.msra.mxu0 %v894
    %946 = vmatprep.subr.bf16.mxu0 0
    %947 = vmatpush1.bf16.xpose.msra.mxu0 0
    %948 = vmatprep.subr.bf16.mxu0 0
    %949 = vmatpush1.bf16.xpose.msra.mxu0 0
    %950 = vmatprep.subr.bf16.mxu0 0
    %951 = vmatpush1.bf16.xpose.msra.mxu0 0
    %952 = vmatprep.subr.bf16.mxu0 0
    %953 = vmatpush1.bf16.xpose.msra.mxu0 0
    %954 = vmatprep.subr.bf16.mxu0 0
    %955 = vmatpush1.bf16.xpose.msra.mxu0 0
    %956 = vmatprep.subr.bf16.mxu0 0
    %957 = vmatpush1.bf16.xpose.msra.mxu0 0
    %958 = vmatprep.subr.bf16.mxu0 0
    %959 = vmatpush1.bf16.xpose.msra.mxu0 0
    %960 = vmatprep.subr.bf16.mxu0 0
    %961 = vmatpush1.bf16.xpose.msra.mxu0 0
    %962 = vmatprep.subr.bf16.mxu0 0
    %963 = vmatpush1.bf16.xpose.msra.mxu0 0
    %964 = vmatprep.subr.bf16.mxu0 0
    %965 = vmatpush1.bf16.xpose.msra.mxu0 0
    %966 = vmatprep.subr.bf16.mxu0 0
    %967 = vmatpush1.bf16.xpose.msra.mxu0 0
    %968 = vmatprep.subr.bf16.mxu0 0
    %969 = vmatpush1.bf16.xpose.msra.mxu0 0
    %970 = vmatprep.subr.bf16.mxu0 0
    %971 = vmatpush1.bf16.xpose.msra.mxu0 0
    %972 = vmatprep.subr.bf16.mxu0 0
    %973 = vmatpush1.bf16.xpose.msra.mxu0 0
    %974 = vmatprep.subr.bf16.mxu0 0
    %975 = vmatpush1.bf16.xpose.msra.mxu0 0
    %976 = vmatprep.mubr.bf16.mxu0 0
    %977 = vmatmul.mubr.bf16.gmra.mrb[0].mxu0 %v942
    %v978 = vpop.f32.mrb[0].mxu0
    %v979 = vadd.f32 0.0, %v978
    %v980 = vpop.f32.mrb[0].mxu0
    %v981 = vpop.f32.mrb[0].mxu0
    %v982 = vpop.f32.mrb[0].mxu0
    %983 = vdwg.mxu0
    %985 = vrot.lane.b32.xlu0 %v934, 88
    %v986 = vpop.permute.xlu0 %985
    %988 = vst.msk [vmem:[#allocation3] sm:$0xff] %vm212, %v986
    %989 = vset.pattern.permute.xlu0 40
    %990 = vperm.xlu0 %989, %v934
    %v991 = vpop.permute.xlu0 %990
    %v993 = vlaneseq
    %v994 = vshrl.u32 %v993, 7
    %v995 = vsub.s32 0, %v994
    %v996 = vrot.slane %v979, %v995
    %v997 = vadd.f32 %v991, %v996
    %vm998 = vcmp.ge.f32.partialorder %v997, 0.0
    %v999 = vmul.f32 %v997, 0.2
    %v1000 = vsel %vm998, %v997, %v999
    %v1001 = vadd.f32 %v1000, %v106
    %v1002 = vsel %vm227, %v1001, -inf
    %1003 = vmax.xlane.f32.xlu0 %v1002
    %v1004 = vpop.xlane.xlu0 %1003
    %v1005 = vsub.f32 %v1001, %v1004
    %v1006 = vmul.f32 %v1005, 1.442695
    %v1007 = vpow.pop %v1006
    %v1008 = vsel %vm227, %v1007, 0.0
    %1009 = vadd.xlane.f32.xlu0 %v1008
    %v1010 = vpop.xlane.xlu0 %1009
    %v1011 = vrcp.pop %v1010
    %v1012 = vmul.f32 1.0, %v1011
    %v1013 = vmul.f32 %v1007, %v1012
    %v1014 = vpack.c.bf16 %v1013, %v1013
    %v1015 = vpack.c.bf16 %v934, %v934
    %v1017 = vsel %vm227, %v1014, 0
    %v1020 = vsel %vm245, %v1015, 0
    %1022 = vmatprep.subr.bf16.mxu0 0
    %1023 = vmatpush1.bf16.msra.mxu0 %v1020
    %1024 = vmatprep.subr.bf16.mxu0 0
    %1025 = vmatpush1.bf16.msra.mxu0 0
    %1026 = vmatprep.subr.bf16.mxu0 0
    %1027 = vmatpush1.bf16.msra.mxu0 0
    %1028 = vmatprep.subr.bf16.mxu0 0
    %1029 = vmatpush1.bf16.msra.mxu0 0
    %1030 = vmatprep.subr.bf16.mxu0 0
    %1031 = vmatpush1.bf16.msra.mxu0 0
    %1032 = vmatprep.subr.bf16.mxu0 0
    %1033 = vmatpush1.bf16.msra.mxu0 0
    %1034 = vmatprep.subr.bf16.mxu0 0
    %1035 = vmatpush1.bf16.msra.mxu0 0
    %1036 = vmatprep.subr.bf16.mxu0 0
    %1037 = vmatpush1.bf16.msra.mxu0 0
    %1038 = vmatprep.subr.bf16.mxu0 0
    %1039 = vmatpush1.bf16.msra.mxu0 0
    %1040 = vmatprep.subr.bf16.mxu0 0
    %1041 = vmatpush1.bf16.msra.mxu0 0
    %1042 = vmatprep.subr.bf16.mxu0 0
    %1043 = vmatpush1.bf16.msra.mxu0 0
    %1044 = vmatprep.subr.bf16.mxu0 0
    %1045 = vmatpush1.bf16.msra.mxu0 0
    %1046 = vmatprep.subr.bf16.mxu0 0
    %1047 = vmatpush1.bf16.msra.mxu0 0
    %1048 = vmatprep.subr.bf16.mxu0 0
    %1049 = vmatpush1.bf16.msra.mxu0 0
    %1050 = vmatprep.subr.bf16.mxu0 0
    %1051 = vmatpush1.bf16.msra.mxu0 0
    %1052 = vmatprep.subr.bf16.mxu0 0
    %1053 = vmatpush1.bf16.msra.mxu0 0
    %1054 = vmatprep.mubr.bf16.mxu0 0
    %1055 = vmatmul.mubr.bf16.gmra.mrb[0].mxu0 %v1017
    %v1056 = vpop.f32.mrb[0].mxu0
    %v1057 = vadd.f32 0.0, %v1056
    %v1058 = vpop.f32.mrb[0].mxu0
    %v1059 = vpop.f32.mrb[0].mxu0
    %v1060 = vpop.f32.mrb[0].mxu0
    %1061 = vdwg.mxu0
    %1062 = vst.msk [vmem:[#allocation2] sm:$0xff] %vm227, %v1057
    %1063 = vst.msk [vmem:[#allocation3] sm:$0xff] %vm290, %v1004
    %1064 = vst.msk [vmem:[#allocation3] sm:$0xff] %vm292, %v1012
    %1065 = vset.pattern.permute.xlu0 41
    %1066 = vperm.xlu0 %1065, %v934
    %v1067 = vpop.permute.xlu0 %1066
    %v1069 = vlaneseq
    %v1070 = vshrl.u32 %v1069, 7
    %v1071 = vsub.s32 1, %v1070
    %v1072 = vrot.slane %v979, %v1071
    %v1073 = vadd.f32 %v1067, %v1072
    %vm1074 = vcmp.ge.f32.partialorder %v1073, 0.0
    %v1075 = vmul.f32 %v1073, 0.2
    %v1076 = vsel %vm1074, %v1073, %v1075
    %v1077 = vadd.f32 %v1076, %v106
    %v1078 = vsel %vm227, %v1077, -inf
    %1079 = vmax.xlane.f32.xlu0 %v1078
    %v1080 = vpop.xlane.xlu0 %1079
    %v1081 = vsub.f32 %v1077, %v1080
    %v1082 = vmul.f32 %v1081, 1.442695
    %v1083 = vpow.pop %v1082
    %v1084 = vsel %vm227, %v1083, 0.0
    %1085 = vadd.xlane.f32.xlu0 %v1084
    %v1086 = vpop.xlane.xlu0 %1085
    %v1087 = vrcp.pop %v1086
    %v1088 = vmul.f32 1.0, %v1087
    %v1089 = vmul.f32 %v1083, %v1088
    %v1090 = vpack.c.bf16 %v1089, %v1089
    %1092 = vrot.lane.b32.xlu0 %v1015, 120
    %v1093 = vpop.permute.xlu0 %1092
    %v1095 = vsel %vm227, %v1090, 0
    %v1098 = vsel %vm245, %v1093, 0
    %1100 = vmatprep.subr.bf16.mxu0 0
    %1101 = vmatpush1.bf16.msra.mxu0 %v1098
    %1102 = vmatprep.subr.bf16.mxu0 0
    %1103 = vmatpush1.bf16.msra.mxu0 0
    %1104 = vmatprep.subr.bf16.mxu0 0
    %1105 = vmatpush1.bf16.msra.mxu0 0
    %1106 = vmatprep.subr.bf16.mxu0 0
    %1107 = vmatpush1.bf16.msra.mxu0 0
    %1108 = vmatprep.subr.bf16.mxu0 0
    %1109 = vmatpush1.bf16.msra.mxu0 0
    %1110 = vmatprep.subr.bf16.mxu0 0
    %1111 = vmatpush1.bf16.msra.mxu0 0
    %1112 = vmatprep.subr.bf16.mxu0 0
    %1113 = vmatpush1.bf16.msra.mxu0 0
    %1114 = vmatprep.subr.bf16.mxu0 0
    %1115 = vmatpush1.bf16.msra.mxu0 0
    %1116 = vmatprep.subr.bf16.mxu0 0
    %1117 = vmatpush1.bf16.msra.mxu0 0
    %1118 = vmatprep.subr.bf16.mxu0 0
    %1119 = vmatpush1.bf16.msra.mxu0 0
    %1120 = vmatprep.subr.bf16.mxu0 0
    %1121 = vmatpush1.bf16.msra.mxu0 0
    %1122 = vmatprep.subr.bf16.mxu0 0
    %1123 = vmatpush1.bf16.msra.mxu0 0
    %1124 = vmatprep.subr.bf16.mxu0 0
    %1125 = vmatpush1.bf16.msra.mxu0 0
    %1126 = vmatprep.subr.bf16.mxu0 0
    %1127 = vmatpush1.bf16.msra.mxu0 0
    %1128 = vmatprep.subr.bf16.mxu0 0
    %1129 = vmatpush1.bf16.msra.mxu0 0
    %1130 = vmatprep.subr.bf16.mxu0 0
    %1131 = vmatpush1.bf16.msra.mxu0 0
    %1132 = vmatprep.mubr.bf16.mxu0 0
    %1133 = vmatmul.mubr.bf16.gmra.mrb[0].mxu0 %v1095
    %v1134 = vpop.f32.mrb[0].mxu0
    %v1135 = vadd.f32 0.0, %v1134
    %v1136 = vpop.f32.mrb[0].mxu0
    %v1137 = vpop.f32.mrb[0].mxu0
    %v1138 = vpop.f32.mrb[0].mxu0
    %1139 = vdwg.mxu0
    %1141 = vrot.lane.b32.xlu0 %v1135, 8
    %v1142 = vpop.permute.xlu0 %1141
    %1144 = vst.msk [vmem:[#allocation2] sm:$0xff] %vm373, %v1142
    %1145 = vst.msk [vmem:[#allocation3] sm:$0xff] %vm375, %v1080
    %1146 = vst.msk [vmem:[#allocation3] sm:$0xff] %vm377, %v1088
    %1147 = vset.pattern.permute.xlu0 42
    %1148 = vperm.xlu0 %1147, %v934
    %v1149 = vpop.permute.xlu0 %1148
    %v1151 = vlaneseq
    %v1152 = vshrl.u32 %v1151, 7
    %v1153 = vsub.s32 2, %v1152
    %v1154 = vrot.slane %v979, %v1153
    %v1155 = vadd.f32 %v1149, %v1154
    %vm1156 = vcmp.ge.f32.partialorder %v1155, 0.0
    %v1157 = vmul.f32 %v1155, 0.2
    %v1158 = vsel %vm1156, %v1155, %v1157
    %v1159 = vadd.f32 %v1158, %v106
    %v1160 = vsel %vm227, %v1159, -inf
    %1161 = vmax.xlane.f32.xlu0 %v1160
    %v1162 = vpop.xlane.xlu0 %1161
    %v1163 = vsub.f32 %v1159, %v1162
    %v1164 = vmul.f32 %v1163, 1.442695
    %v1165 = vpow.pop %v1164
    %v1166 = vsel %vm227, %v1165, 0.0
    %1167 = vadd.xlane.f32.xlu0 %v1166
    %v1168 = vpop.xlane.xlu0 %1167
    %v1169 = vrcp.pop %v1168
    %v1170 = vmul.f32 1.0, %v1169
    %v1171 = vmul.f32 %v1165, %v1170
    %v1172 = vpack.c.bf16 %v1171, %v1171
    %1173 = vrot.lane.b32.xlu0 %v1015, 112
    %v1174 = vpop.permute.xlu0 %1173
    %v1176 = vsel %vm227, %v1172, 0
    %v1179 = vsel %vm245, %v1174, 0
    %1181 = vmatprep.subr.bf16.mxu0 0
    %1182 = vmatpush1.bf16.msra.mxu0 %v1179
    %1183 = vmatprep.subr.bf16.mxu0 0
    %1184 = vmatpush1.bf16.msra.mxu0 0
    %1185 = vmatprep.subr.bf16.mxu0 0
    %1186 = vmatpush1.bf16.msra.mxu0 0
    %1187 = vmatprep.subr.bf16.mxu0 0
    %1188 = vmatpush1.bf16.msra.mxu0 0
    %1189 = vmatprep.subr.bf16.mxu0 0
    %1190 = vmatpush1.bf16.msra.mxu0 0
    %1191 = vmatprep.subr.bf16.mxu0 0
    %1192 = vmatpush1.bf16.msra.mxu0 0
    %1193 = vmatprep.subr.bf16.mxu0 0
    %1194 = vmatpush1.bf16.msra.mxu0 0
    %1195 = vmatprep.subr.bf16.mxu0 0
    %1196 = vmatpush1.bf16.msra.mxu0 0
    %1197 = vmatprep.subr.bf16.mxu0 0
    %1198 = vmatpush1.bf16.msra.mxu0 0
    %1199 = vmatprep.subr.bf16.mxu0 0
    %1200 = vmatpush1.bf16.msra.mxu0 0
    %1201 = vmatprep.subr.bf16.mxu0 0
    %1202 = vmatpush1.bf16.msra.mxu0 0
    %1203 = vmatprep.subr.bf16.mxu0 0
    %1204 = vmatpush1.bf16.msra.mxu0 0
    %1205 = vmatprep.subr.bf16.mxu0 0
    %1206 = vmatpush1.bf16.msra.mxu0 0
    %1207 = vmatprep.subr.bf16.mxu0 0
    %1208 = vmatpush1.bf16.msra.mxu0 0
    %1209 = vmatprep.subr.bf16.mxu0 0
    %1210 = vmatpush1.bf16.msra.mxu0 0
    %1211 = vmatprep.subr.bf16.mxu0 0
    %1212 = vmatpush1.bf16.msra.mxu0 0
    %1213 = vmatprep.mubr.bf16.mxu0 0
    %1214 = vmatmul.mubr.bf16.gmra.mrb[0].mxu0 %v1176
    %v1215 = vpop.f32.mrb[0].mxu0
    %v1216 = vadd.f32 0.0, %v1215
    %v1217 = vpop.f32.mrb[0].mxu0
    %v1218 = vpop.f32.mrb[0].mxu0
    %v1219 = vpop.f32.mrb[0].mxu0
    %1220 = vdwg.mxu0
    %1222 = vrot.lane.b32.xlu0 %v1216, 16
    %v1223 = vpop.permute.xlu0 %1222
    %1225 = vst.msk [vmem:[#allocation2] sm:$0xff] %vm457, %v1223
    %1226 = vst.msk [vmem:[#allocation3] sm:$0xff] %vm459, %v1162
    %1227 = vst.msk [vmem:[#allocation3] sm:$0xff] %vm461, %v1170
    %1228 = vset.pattern.permute.xlu0 43
    %1229 = vperm.xlu0 %1228, %v934
    %v1230 = vpop.permute.xlu0 %1229
    %v1232 = vlaneseq
    %v1233 = vshrl.u32 %v1232, 7
    %v1234 = vsub.s32 3, %v1233
    %v1235 = vrot.slane %v979, %v1234
    %v1236 = vadd.f32 %v1230, %v1235
    %vm1237 = vcmp.ge.f32.partialorder %v1236, 0.0
    %v1238 = vmul.f32 %v1236, 0.2
    %v1239 = vsel %vm1237, %v1236, %v1238
    %v1240 = vadd.f32 %v1239, %v106
    %v1241 = vsel %vm227, %v1240, -inf
    %1242 = vmax.xlane.f32.xlu0 %v1241
    %v1243 = vpop.xlane.xlu0 %1242
    %v1244 = vsub.f32 %v1240, %v1243
    %v1245 = vmul.f32 %v1244, 1.442695
    %v1246 = vpow.pop %v1245
    %v1247 = vsel %vm227, %v1246, 0.0
    %1248 = vadd.xlane.f32.xlu0 %v1247
    %v1249 = vpop.xlane.xlu0 %1248
    %v1250 = vrcp.pop %v1249
    %v1251 = vmul.f32 1.0, %v1250
    %v1252 = vmul.f32 %v1246, %v1251
    %v1253 = vpack.c.bf16 %v1252, %v1252
    %1254 = vrot.lane.b32.xlu0 %v1015, 104
    %v1255 = vpop.permute.xlu0 %1254
    %v1257 = vsel %vm227, %v1253, 0
    %v1260 = vsel %vm245, %v1255, 0
    %1262 = vmatprep.subr.bf16.mxu0 0
    %1263 = vmatpush1.bf16.msra.mxu0 %v1260
    %1264 = vmatprep.subr.bf16.mxu0 0
    %1265 = vmatpush1.bf16.msra.mxu0 0
    %1266 = vmatprep.subr.bf16.mxu0 0
    %1267 = vmatpush1.bf16.msra.mxu0 0
    %1268 = vmatprep.subr.bf16.mxu0 0
    %1269 = vmatpush1.bf16.msra.mxu0 0
    %1270 = vmatprep.subr.bf16.mxu0 0
    %1271 = vmatpush1.bf16.msra.mxu0 0
    %1272 = vmatprep.subr.bf16.mxu0 0
    %1273 = vmatpush1.bf16.msra.mxu0 0
    %1274 = vmatprep.subr.bf16.mxu0 0
    %1275 = vmatpush1.bf16.msra.mxu0 0
    %1276 = vmatprep.subr.bf16.mxu0 0
    %1277 = vmatpush1.bf16.msra.mxu0 0
    %1278 = vmatprep.subr.bf16.mxu0 0
    %1279 = vmatpush1.bf16.msra.mxu0 0
    %1280 = vmatprep.subr.bf16.mxu0 0
    %1281 = vmatpush1.bf16.msra.mxu0 0
    %1282 = vmatprep.subr.bf16.mxu0 0
    %1283 = vmatpush1.bf16.msra.mxu0 0
    %1284 = vmatprep.subr.bf16.mxu0 0
    %1285 = vmatpush1.bf16.msra.mxu0 0
    %1286 = vmatprep.subr.bf16.mxu0 0
    %1287 = vmatpush1.bf16.msra.mxu0 0
    %1288 = vmatprep.subr.bf16.mxu0 0
    %1289 = vmatpush1.bf16.msra.mxu0 0
    %1290 = vmatprep.subr.bf16.mxu0 0
    %1291 = vmatpush1.bf16.msra.mxu0 0
    %1292 = vmatprep.subr.bf16.mxu0 0
    %1293 = vmatpush1.bf16.msra.mxu0 0
    %1294 = vmatprep.mubr.bf16.mxu0 0
    %1295 = vmatmul.mubr.bf16.gmra.mrb[0].mxu0 %v1257
    %v1296 = vpop.f32.mrb[0].mxu0
    %v1297 = vadd.f32 0.0, %v1296
    %v1298 = vpop.f32.mrb[0].mxu0
    %v1299 = vpop.f32.mrb[0].mxu0
    %v1300 = vpop.f32.mrb[0].mxu0
    %1301 = vdwg.mxu0
    %1303 = vrot.lane.b32.xlu0 %v1297, 24
    %v1304 = vpop.permute.xlu0 %1303
    %1306 = vst.msk [vmem:[#allocation2] sm:$0xff] %vm541, %v1304
    %1307 = vst.msk [vmem:[#allocation3] sm:$0xff] %vm543, %v1243
    %1308 = vst.msk [vmem:[#allocation3] sm:$0xff] %vm545, %v1251
    %1309 = vset.pattern.permute.xlu0 44
    %1310 = vperm.xlu0 %1309, %v934
    %v1311 = vpop.permute.xlu0 %1310
    %v1313 = vlaneseq
    %v1314 = vshrl.u32 %v1313, 7
    %v1315 = vsub.s32 4, %v1314
    %v1316 = vrot.slane %v979, %v1315
    %v1317 = vadd.f32 %v1311, %v1316
    %vm1318 = vcmp.ge.f32.partialorder %v1317, 0.0
    %v1319 = vmul.f32 %v1317, 0.2
    %v1320 = vsel %vm1318, %v1317, %v1319
    %v1321 = vadd.f32 %v1320, %v106
    %v1322 = vsel %vm227, %v1321, -inf
    %1323 = vmax.xlane.f32.xlu0 %v1322
    %v1324 = vpop.xlane.xlu0 %1323
    %v1325 = vsub.f32 %v1321, %v1324
    %v1326 = vmul.f32 %v1325, 1.442695
    %v1327 = vpow.pop %v1326
    %v1328 = vsel %vm227, %v1327, 0.0
    %1329 = vadd.xlane.f32.xlu0 %v1328
    %v1330 = vpop.xlane.xlu0 %1329
    %v1331 = vrcp.pop %v1330
    %v1332 = vmul.f32 1.0, %v1331
    %v1333 = vmul.f32 %v1327, %v1332
    %v1334 = vpack.c.bf16 %v1333, %v1333
    %1335 = vrot.lane.b32.xlu0 %v1015, 96
    %v1336 = vpop.permute.xlu0 %1335
    %v1338 = vsel %vm227, %v1334, 0
    %v1341 = vsel %vm245, %v1336, 0
    %1343 = vmatprep.subr.bf16.mxu0 0
    %1344 = vmatpush1.bf16.msra.mxu0 %v1341
    %1345 = vmatprep.subr.bf16.mxu0 0
    %1346 = vmatpush1.bf16.msra.mxu0 0
    %1347 = vmatprep.subr.bf16.mxu0 0
    %1348 = vmatpush1.bf16.msra.mxu0 0
    %1349 = vmatprep.subr.bf16.mxu0 0
    %1350 = vmatpush1.bf16.msra.mxu0 0
    %1351 = vmatprep.subr.bf16.mxu0 0
    %1352 = vmatpush1.bf16.msra.mxu0 0
    %1353 = vmatprep.subr.bf16.mxu0 0
    %1354 = vmatpush1.bf16.msra.mxu0 0
    %1355 = vmatprep.subr.bf16.mxu0 0
    %1356 = vmatpush1.bf16.msra.mxu0 0
    %1357 = vmatprep.subr.bf16.mxu0 0
    %1358 = vmatpush1.bf16.msra.mxu0 0
    %1359 = vmatprep.subr.bf16.mxu0 0
    %1360 = vmatpush1.bf16.msra.mxu0 0
    %1361 = vmatprep.subr.bf16.mxu0 0
    %1362 = vmatpush1.bf16.msra.mxu0 0
    %1363 = vmatprep.subr.bf16.mxu0 0
    %1364 = vmatpush1.bf16.msra.mxu0 0
    %1365 = vmatprep.subr.bf16.mxu0 0
    %1366 = vmatpush1.bf16.msra.mxu0 0
    %1367 = vmatprep.subr.bf16.mxu0 0
    %1368 = vmatpush1.bf16.msra.mxu0 0
    %1369 = vmatprep.subr.bf16.mxu0 0
    %1370 = vmatpush1.bf16.msra.mxu0 0
    %1371 = vmatprep.subr.bf16.mxu0 0
    %1372 = vmatpush1.bf16.msra.mxu0 0
    %1373 = vmatprep.subr.bf16.mxu0 0
    %1374 = vmatpush1.bf16.msra.mxu0 0
    %1375 = vmatprep.mubr.bf16.mxu0 0
    %1376 = vmatmul.mubr.bf16.gmra.mrb[0].mxu0 %v1338
    %v1377 = vpop.f32.mrb[0].mxu0
    %v1378 = vadd.f32 0.0, %v1377
    %v1379 = vpop.f32.mrb[0].mxu0
    %v1380 = vpop.f32.mrb[0].mxu0
    %v1381 = vpop.f32.mrb[0].mxu0
    %1382 = vdwg.mxu0
    %1384 = vrot.lane.b32.xlu0 %v1378, 32
    %v1385 = vpop.permute.xlu0 %1384
    %1387 = vst.msk [vmem:[#allocation2] sm:$0xff] %vm625, %v1385
    %1388 = vst.msk [vmem:[#allocation3] sm:$0xff] %vm627, %v1324
    %1389 = vst.msk [vmem:[#allocation3] sm:$0xff] %vm629, %v1332
    %v1390 = vld [vmem:[#allocation3] sm:$0xff]
    %1391 = vmatprep.subr.mxu0 0.0
    %1392 = vmatpush1.msra.mxu0 %v1390
    %1393 = vmatprep.subr.mxu0 0.0
    %1394 = vmatpush1.msra.mxu0 0.0
    %1395 = vmatprep.subr.mxu0 0.0
    %1396 = vmatpush1.msra.mxu0 0.0
    %1397 = vmatprep.subr.mxu0 0.0
    %1398 = vmatpush1.msra.mxu0 0.0
    %1399 = vmatprep.subr.mxu0 0.0
    %1400 = vmatpush1.msra.mxu0 0.0
    %1401 = vmatprep.subr.mxu0 0.0
    %1402 = vmatpush1.msra.mxu0 0.0
    %1403 = vmatprep.subr.mxu0 0.0
    %1404 = vmatpush1.msra.mxu0 0.0
    %1405 = vmatprep.subr.mxu0 0.0
    %1406 = vmatpush1.msra.mxu0 0.0
    %1407 = vmatprep.subr.mxu0 0.0
    %1408 = vmatpush1.msra.mxu0 0.0
    %1409 = vmatprep.subr.mxu0 0.0
    %1410 = vmatpush1.msra.mxu0 0.0
    %1411 = vmatprep.subr.mxu0 0.0
    %1412 = vmatpush1.msra.mxu0 0.0
    %1413 = vmatprep.subr.mxu0 0.0
    %1414 = vmatpush1.msra.mxu0 0.0
    %1415 = vmatprep.subr.mxu0 0.0
    %1416 = vmatpush1.msra.mxu0 0.0
    %1417 = vmatprep.subr.mxu0 0.0
    %1418 = vmatpush1.msra.mxu0 0.0
    %1419 = vmatprep.subr.mxu0 0.0
    %1420 = vmatpush1.msra.mxu0 0.0
    %1421 = vmatprep.subr.mxu0 0.0
    %1422 = vmatpush1.msra.mxu0 0.0
    %1423 = vmatprep.subr.mxu0 0.0
    %1424 = vmatpush1.msra.mxu0 0.0
    %1425 = vmatprep.subr.mxu0 0.0
    %1426 = vmatpush1.msra.mxu0 0.0
    %1427 = vmatprep.subr.mxu0 0.0
    %1428 = vmatpush1.msra.mxu0 0.0
    %1429 = vmatprep.subr.mxu0 0.0
    %1430 = vmatpush1.msra.mxu0 0.0
    %1431 = vmatprep.subr.mxu0 0.0
    %1432 = vmatpush1.msra.mxu0 0.0
    %1433 = vmatprep.subr.mxu0 0.0
    %1434 = vmatpush1.msra.mxu0 0.0
    %1435 = vmatprep.subr.mxu0 0.0
    %1436 = vmatpush1.msra.mxu0 0.0
    %1437 = vmatprep.subr.mxu0 0.0
    %1438 = vmatpush1.msra.mxu0 0.0
    %1439 = vmatprep.subr.mxu0 0.0
    %1440 = vmatpush1.msra.mxu0 0.0
    %1441 = vmatprep.subr.mxu0 0.0
    %1442 = vmatpush1.msra.mxu0 0.0
    %1443 = vmatprep.subr.mxu0 0.0
    %1444 = vmatpush1.msra.mxu0 0.0
    %1445 = vmatprep.subr.mxu0 0.0
    %1446 = vmatpush1.msra.mxu0 0.0
    %1447 = vmatprep.subr.mxu0 0.0
    %1448 = vmatpush1.msra.mxu0 0.0
    %1449 = vmatprep.subr.mxu0 0.0
    %1450 = vmatpush1.msra.mxu0 0.0
    %1451 = vmatprep.subr.mxu0 0.0
    %1452 = vmatpush1.msra.mxu0 0.0
    %1453 = vmatprep.subr.mxu0 0.0
    %1454 = vmatpush1.msra.mxu0 0.0
    %1455 = vmatprep.mubr.f32.mxu0 0.0
    %1456 = vmatmul.mubr.f32.gmra.mrb[0].mxu0 %v633
    %v1457 = vpop.f32.mrb[0].mxu0
    %v1458 = vadd.f32 0.0, %v1457
    %v1459 = vpop.f32.mrb[0].mxu0
    %1460 = vmatprep.mubr.f32.mxu0 0.0
    %1461 = vmatmul.mubr.f32.gmra.mrb[0].mxu0 %v636
    %v1462 = vpop.f32.mrb[0].mxu0
    %v1463 = vadd.f32 0.0, %v1462
    %v1464 = vpop.f32.mrb[0].mxu0
    %1465 = vmatprep.mubr.f32.mxu0 0.0
    %1466 = vmatmul.mubr.f32.gmra.mrb[0].mxu0 %v639
    %v1467 = vpop.f32.mrb[0].mxu0
    %v1468 = vadd.f32 0.0, %v1467
    %v1469 = vpop.f32.mrb[0].mxu0
    %1470 = vdwg.mxu0
    %v1472 = vsel %vm227, %v979, 0
    %1474 = vmatprep.subr.mxu0 0.0
    %1475 = vmatpush1.xpose.msra.mxu0 %v1472
    %1476 = vmatprep.subr.mxu0 0.0
    %1477 = vmatpush1.xpose.msra.mxu0 0.0
    %1478 = vmatprep.subr.mxu0 0.0
    %1479 = vmatpush1.xpose.msra.mxu0 0.0
    %1480 = vmatprep.subr.mxu0 0.0
    %1481 = vmatpush1.xpose.msra.mxu0 0.0
    %1482 = vmatprep.subr.mxu0 0.0
    %1483 = vmatpush1.xpose.msra.mxu0 0.0
    %1484 = vmatprep.subr.mxu0 0.0
    %1485 = vmatpush1.xpose.msra.mxu0 0.0
    %1486 = vmatprep.subr.mxu0 0.0
    %1487 = vmatpush1.xpose.msra.mxu0 0.0
    %1488 = vmatprep.subr.mxu0 0.0
    %1489 = vmatpush1.xpose.msra.mxu0 0.0
    %1490 = vmatprep.subr.mxu0 0.0
    %1491 = vmatpush1.xpose.msra.mxu0 0.0
    %1492 = vmatprep.subr.mxu0 0.0
    %1493 = vmatpush1.xpose.msra.mxu0 0.0
    %1494 = vmatprep.subr.mxu0 0.0
    %1495 = vmatpush1.xpose.msra.mxu0 0.0
    %1496 = vmatprep.subr.mxu0 0.0
    %1497 = vmatpush1.xpose.msra.mxu0 0.0
    %1498 = vmatprep.subr.mxu0 0.0
    %1499 = vmatpush1.xpose.msra.mxu0 0.0
    %1500 = vmatprep.subr.mxu0 0.0
    %1501 = vmatpush1.xpose.msra.mxu0 0.0
    %1502 = vmatprep.subr.mxu0 0.0
    %1503 = vmatpush1.xpose.msra.mxu0 0.0
    %1504 = vmatprep.subr.mxu0 0.0
    %1505 = vmatpush1.xpose.msra.mxu0 0.0
    %1506 = vmatprep.subr.mxu0 0.0
    %1507 = vmatpush1.xpose.msra.mxu0 0.0
    %1508 = vmatprep.subr.mxu0 0.0
    %1509 = vmatpush1.xpose.msra.mxu0 0.0
    %1510 = vmatprep.subr.mxu0 0.0
    %1511 = vmatpush1.xpose.msra.mxu0 0.0
    %1512 = vmatprep.subr.mxu0 0.0
    %1513 = vmatpush1.xpose.msra.mxu0 0.0
    %1514 = vmatprep.subr.mxu0 0.0
    %1515 = vmatpush1.xpose.msra.mxu0 0.0
    %1516 = vmatprep.subr.mxu0 0.0
    %1517 = vmatpush1.xpose.msra.mxu0 0.0
    %1518 = vmatprep.subr.mxu0 0.0
    %1519 = vmatpush1.xpose.msra.mxu0 0.0
    %1520 = vmatprep.subr.mxu0 0.0
    %1521 = vmatpush1.xpose.msra.mxu0 0.0
    %1522 = vmatprep.subr.mxu0 0.0
    %1523 = vmatpush1.xpose.msra.mxu0 0.0
    %1524 = vmatprep.subr.mxu0 0.0
    %1525 = vmatpush1.xpose.msra.mxu0 0.0
    %1526 = vmatprep.subr.mxu0 0.0
    %1527 = vmatpush1.xpose.msra.mxu0 0.0
    %1528 = vmatprep.subr.mxu0 0.0
    %1529 = vmatpush1.xpose.msra.mxu0 0.0
    %1530 = vmatprep.subr.mxu0 0.0
    %1531 = vmatpush1.xpose.msra.mxu0 0.0
    %1532 = vmatprep.subr.mxu0 0.0
    %1533 = vmatpush1.xpose.msra.mxu0 0.0
    %1534 = vmatprep.subr.mxu0 0.0
    %1535 = vmatpush1.xpose.msra.mxu0 0.0
    %1536 = vmatprep.subr.mxu0 0.0
    %1537 = vmatpush1.xpose.msra.mxu0 0.0
    %1538 = vmatprep.mubr.f32.mxu0 0.0
    %1539 = vmatmul.mubr.f32.gmra.mrb[0].mxu0 %v722
    %v1540 = vpop.f32.mrb[0].mxu0
    %v1541 = vadd.f32 0.0, %v1540
    %v1542 = vpop.f32.mrb[0].mxu0
    %1543 = vmatprep.mubr.f32.mxu0 0.0
    %1544 = vmatmul.mubr.f32.gmra.mrb[0].mxu0 %v725
    %v1545 = vpop.f32.mrb[0].mxu0
    %v1546 = vadd.f32 0.0, %v1545
    %v1547 = vpop.f32.mrb[0].mxu0
    %1548 = vmatprep.mubr.f32.mxu0 0.0
    %1549 = vmatmul.mubr.f32.gmra.mrb[0].mxu0 %v728
    %v1550 = vpop.f32.mrb[0].mxu0
    %v1551 = vadd.f32 0.0, %v1550
    %v1552 = vpop.f32.mrb[0].mxu0
    %1553 = vdwg.mxu0
    %v1554 = vadd.f32 %v1458, %v1541
    %v1555 = vadd.f32 %v1463, %v1546
    %v1556 = vadd.f32 %v1468, %v1551
    %vm1557 = vcmp.ge.f32.partialorder %v1554, 0.0
    %vm1558 = vcmp.ge.f32.partialorder %v1555, 0.0
    %vm1559 = vcmp.ge.f32.partialorder %v1556, 0.0
    %v1560 = vmul.f32 %v1554, 0.2
    %v1561 = vmul.f32 %v1555, 0.2
    %v1562 = vmul.f32 %v1556, 0.2
    %v1563 = vsel %vm1557, %v1554, %v1560
    %v1564 = vsel %vm1558, %v1555, %v1561
    %v1565 = vsel %vm1559, %v1556, %v1562
    %1569 = vrot.lane.b32.xlu0 %v1458, 123
    %v1570 = vpop.permute.xlu0 %1569
    %1571 = vrot.lane.b32.xlu0 %v1463, 123
    %v1572 = vpop.permute.xlu0 %1571
    %1573 = vrot.lane.b32.xlu0 %v1468, 123
    %v1574 = vpop.permute.xlu0 %1573
    %v1578 = vsub.f32 %v1563, %v1570
    %v1579 = vsub.f32 %v1564, %v1572
    %v1580 = vsub.f32 %v1565, %v1574
    %v1581 = vmul.f32 %v1578, 1.442695
    %v1582 = vpow.pop %v1581
    %v1583 = vmul.f32 %v1579, 1.442695
    %v1584 = vpow.pop %v1583
    %v1585 = vmul.f32 %v1580, 1.442695
    %v1586 = vpow.pop %v1585
    %1587 = vrot.lane.b32.xlu0 %v1458, 118
    %v1588 = vpop.permute.xlu0 %1587
    %1589 = vrot.lane.b32.xlu0 %v1463, 118
    %v1590 = vpop.permute.xlu0 %1589
    %1591 = vrot.lane.b32.xlu0 %v1468, 118
    %v1592 = vpop.permute.xlu0 %1591
    %v1596 = vmul.f32 %v1582, %v1588
    %v1597 = vmul.f32 %v1584, %v1590
    %v1598 = vmul.f32 %v1586, %v1592
    %1602 = vrot.lane.b32.xlu0 %v1596, 5
    %v1603 = vpop.permute.xlu0 %1602
    %1604 = vrot.lane.b32.xlu0 %v1597, 5
    %v1605 = vpop.permute.xlu0 %1604
    %1606 = vrot.lane.b32.xlu0 %v1598, 5
    %v1607 = vpop.permute.xlu0 %1606
    %vm1611 = vcmask 80936
    %1612 = vst.msk [vmem:[%s16] sm:$0xff] %vm1611, %v1603
    %1613 = vst.msk [vmem:[%s16 + $0x8] sm:$0xff] %vm1611, %v1605
    %1614 = vst.msk [vmem:[%s16 + $0x10] sm:$0xff] %vm1611, %v1607
    %v1615 = vld [vmem:[#allocation2] sm:$0xff]
    %v1616 = vld [vmem:[%s9] sm:$0x1]
    %v1617 = vlaneseq
    %v1618 = vshrl.u32 %v1617, 7
    %v1619 = vsub.s32 0, %v1618
    %v1620 = vrot.slane %v1616, %v1619
    %v1621 = vadd.f32 %v1615, %v1620
    %vm1622 = vcmp.ge.f32.partialorder %v1621, 0.0
    %v1623 = vmul.f32 %v1621, 0.01
    %v1624 = vsel %vm1622, %v1621, %v1623
    %v1625 = vld [vmem:[%s9 + $0x1] sm:$0x1]
    %v1626 = vlaneseq
    %v1627 = vshrl.u32 %v1626, 7
    %v1628 = vsub.s32 0, %v1627
    %v1629 = vrot.slane %v1625, %v1628
    %v1630 = vmul.f32 %v1624, %v1629
    %v1631 = vld [vmem:[%s9 + $0x2] sm:$0x1]
    %v1632 = vlaneseq
    %v1633 = vshrl.u32 %v1632, 7
    %v1634 = vsub.s32 0, %v1633
    %v1635 = vrot.slane %v1631, %v1634
    %v1636 = vadd.f32 %v1630, %v1635
    %v1637 = vld [vmem:[%s10] sm:$0xff]
    %v1638 = vld [vmem:[%s10 + $0x8] sm:$0xff]
    %v1639 = vld [vmem:[%s10 + $0x10] sm:$0xff]
    %v1640 = vld [vmem:[%s10 + $0x18] sm:$0xff]
    %v1641 = vld [vmem:[%s10 + $0x20] sm:$0xff]
    %v1642 = vpack.c.bf16 %v1636, %v1636
    %v1643 = vpack.c.bf16 %v1638, %v1637
    %v1644 = vpack.c.bf16 %v1640, %v1639
    %v1645 = vpack.c.bf16 %v1641, %v1641
    %v1646 = vld [vmem:[%s12] sm:$0x1]
    %v1647 = vlaneseq
    %v1648 = vshrl.u32 %v1647, 7
    %v1649 = vsub.s32 0, %v1648
    %v1650 = vrot.slane %v1646, %v1649
    %v1652 = vsel %vm892, %v1642, 0
    %v1655 = vsel %vm245, %v1645, 0
    %1657 = vmatprep.subr.bf16.mxu0 0
    %1658 = vmatpush1.bf16.msra.mxu0 %v1643
    %1659 = vmatprep.subr.bf16.mxu0 0
    %1660 = vmatpush1.bf16.msra.mxu0 %v1644
    %1661 = vmatprep.subr.bf16.mxu0 0
    %1662 = vmatpush1.bf16.msra.mxu0 %v1655
    %1663 = vmatprep.subr.bf16.mxu0 0
    %1664 = vmatpush1.bf16.msra.mxu0 0
    %1665 = vmatprep.subr.bf16.mxu0 0
    %1666 = vmatpush1.bf16.msra.mxu0 0
    %1667 = vmatprep.subr.bf16.mxu0 0
    %1668 = vmatpush1.bf16.msra.mxu0 0
    %1669 = vmatprep.subr.bf16.mxu0 0
    %1670 = vmatpush1.bf16.msra.mxu0 0
    %1671 = vmatprep.subr.bf16.mxu0 0
    %1672 = vmatpush1.bf16.msra.mxu0 0
    %1673 = vmatprep.subr.bf16.mxu0 0
    %1674 = vmatpush1.bf16.msra.mxu0 0
    %1675 = vmatprep.subr.bf16.mxu0 0
    %1676 = vmatpush1.bf16.msra.mxu0 0
    %1677 = vmatprep.subr.bf16.mxu0 0
    %1678 = vmatpush1.bf16.msra.mxu0 0
    %1679 = vmatprep.subr.bf16.mxu0 0
    %1680 = vmatpush1.bf16.msra.mxu0 0
    %1681 = vmatprep.subr.bf16.mxu0 0
    %1682 = vmatpush1.bf16.msra.mxu0 0
    %1683 = vmatprep.subr.bf16.mxu0 0
    %1684 = vmatpush1.bf16.msra.mxu0 0
    %1685 = vmatprep.subr.bf16.mxu0 0
    %1686 = vmatpush1.bf16.msra.mxu0 0
    %1687 = vmatprep.subr.bf16.mxu0 0
    %1688 = vmatpush1.bf16.msra.mxu0 0
    %1689 = vmatprep.mubr.bf16.mxu0 0
    %1690 = vmatmul.mubr.bf16.gmra.mrb[0].mxu0 %v1652
    %v1691 = vpop.f32.mrb[0].mxu0
    %v1692 = vadd.f32 %v1650, %v1691
    %v1693 = vpop.f32.mrb[0].mxu0
    %v1694 = vpop.f32.mrb[0].mxu0
    %v1695 = vpop.f32.mrb[0].mxu0
    %1696 = vdwg.mxu0
    %vm1697 = vcmp.ge.f32.partialorder %v1692, 0.0
    %v1698 = vmul.f32 %v1692, 0.01
    %v1699 = vsel %vm1697, %v1692, %v1698
    %1700 = vst.msk [vmem:[#allocation12] sm:$0xff] %vm892, %v1699
    %v1701 = vld [vmem:[#allocation7] sm:$0x3]
    %v1702 = vpack.c.bf16 %v1701, %v1701
    %v1703 = vpack.c.bf16 %v1699, %v1699
    %v1705 = vsel %vm227, %v1702, 0
    %v1708 = vsel %vm245, %v1703, 0
    %1710 = vmatprep.subr.bf16.mxu0 0
    %1711 = vmatpush1.bf16.msra.mxu0 %v1708
    %1712 = vmatprep.subr.bf16.mxu0 0
    %1713 = vmatpush1.bf16.msra.mxu0 0
    %1714 = vmatprep.subr.bf16.mxu0 0
    %1715 = vmatpush1.bf16.msra.mxu0 0
    %1716 = vmatprep.subr.bf16.mxu0 0
    %1717 = vmatpush1.bf16.msra.mxu0 0
    %1718 = vmatprep.subr.bf16.mxu0 0
    %1719 = vmatpush1.bf16.msra.mxu0 0
    %1720 = vmatprep.subr.bf16.mxu0 0
    %1721 = vmatpush1.bf16.msra.mxu0 0
    %1722 = vmatprep.subr.bf16.mxu0 0
    %1723 = vmatpush1.bf16.msra.mxu0 0
    %1724 = vmatprep.subr.bf16.mxu0 0
    %1725 = vmatpush1.bf16.msra.mxu0 0
    %1726 = vmatprep.subr.bf16.mxu0 0
    %1727 = vmatpush1.bf16.msra.mxu0 0
    %1728 = vmatprep.subr.bf16.mxu0 0
    %1729 = vmatpush1.bf16.msra.mxu0 0
    %1730 = vmatprep.subr.bf16.mxu0 0
    %1731 = vmatpush1.bf16.msra.mxu0 0
    %1732 = vmatprep.subr.bf16.mxu0 0
    %1733 = vmatpush1.bf16.msra.mxu0 0
    %1734 = vmatprep.subr.bf16.mxu0 0
    %1735 = vmatpush1.bf16.msra.mxu0 0
    %1736 = vmatprep.subr.bf16.mxu0 0
    %1737 = vmatpush1.bf16.msra.mxu0 0
    %1738 = vmatprep.subr.bf16.mxu0 0
    %1739 = vmatpush1.bf16.msra.mxu0 0
    %1740 = vmatprep.subr.bf16.mxu0 0
    %1741 = vmatpush1.bf16.msra.mxu0 0
    %1742 = vmatprep.mubr.bf16.mxu0 0
    %1743 = vmatmul.mubr.bf16.gmra.mrb[0].mxu0 %v1705
    %v1744 = vpop.f32.mrb[0].mxu0
    %v1745 = vadd.f32 0.0, %v1744
    %v1746 = vpop.f32.mrb[0].mxu0
    %v1747 = vpop.f32.mrb[0].mxu0
    %v1748 = vpop.f32.mrb[0].mxu0
    %1749 = vdwg.mxu0
    %v1750 = vld [vmem:[%s11] sm:$0xff]
    %v1751 = vld [vmem:[%s11 + $0x8] sm:$0xff]
    %v1752 = vld [vmem:[%s11 + $0x10] sm:$0xff]
    %v1753 = vld [vmem:[%s11 + $0x18] sm:$0xff]
    %v1754 = vld [vmem:[%s11 + $0x20] sm:$0xff]
    %v1755 = vpack.c.bf16 %v1745, %v1745
    %v1756 = vpack.c.bf16 %v1751, %v1750
    %v1757 = vpack.c.bf16 %v1753, %v1752
    %v1758 = vpack.c.bf16 %v1754, %v1754
    %v1759 = vld [vmem:[%s12 + $0x1] sm:$0x1]
    %v1760 = vlaneseq
    %v1761 = vshrl.u32 %v1760, 7
    %v1762 = vsub.s32 0, %v1761
    %v1763 = vrot.slane %v1759, %v1762
    %v1765 = vsel %vm892, %v1755, 0
    %v1768 = vsel %vm245, %v1758, 0
    %1770 = vmatprep.subr.bf16.mxu0 0
    %1771 = vmatpush1.bf16.msra.mxu0 %v1756
    %1772 = vmatprep.subr.bf16.mxu0 0
    %1773 = vmatpush1.bf16.msra.mxu0 %v1757
    %1774 = vmatprep.subr.bf16.mxu0 0
    %1775 = vmatpush1.bf16.msra.mxu0 %v1768
    %1776 = vmatprep.subr.bf16.mxu0 0
    %1777 = vmatpush1.bf16.msra.mxu0 0
    %1778 = vmatprep.subr.bf16.mxu0 0
    %1779 = vmatpush1.bf16.msra.mxu0 0
    %1780 = vmatprep.subr.bf16.mxu0 0
    %1781 = vmatpush1.bf16.msra.mxu0 0
    %1782 = vmatprep.subr.bf16.mxu0 0
    %1783 = vmatpush1.bf16.msra.mxu0 0
    %1784 = vmatprep.subr.bf16.mxu0 0
    %1785 = vmatpush1.bf16.msra.mxu0 0
    %1786 = vmatprep.subr.bf16.mxu0 0
    %1787 = vmatpush1.bf16.msra.mxu0 0
    %1788 = vmatprep.subr.bf16.mxu0 0
    %1789 = vmatpush1.bf16.msra.mxu0 0
    %1790 = vmatprep.subr.bf16.mxu0 0
    %1791 = vmatpush1.bf16.msra.mxu0 0
    %1792 = vmatprep.subr.bf16.mxu0 0
    %1793 = vmatpush1.bf16.msra.mxu0 0
    %1794 = vmatprep.subr.bf16.mxu0 0
    %1795 = vmatpush1.bf16.msra.mxu0 0
    %1796 = vmatprep.subr.bf16.mxu0 0
    %1797 = vmatpush1.bf16.msra.mxu0 0
    %1798 = vmatprep.subr.bf16.mxu0 0
    %1799 = vmatpush1.bf16.msra.mxu0 0
    %1800 = vmatprep.subr.bf16.mxu0 0
    %1801 = vmatpush1.bf16.msra.mxu0 0
    %1802 = vmatprep.mubr.bf16.mxu0 0
    %1803 = vmatmul.mubr.bf16.gmra.mrb[0].mxu0 %v1765
    %v1804 = vpop.f32.mrb[0].mxu0
    %v1805 = vadd.f32 %v1763, %v1804
    %v1806 = vpop.f32.mrb[0].mxu0
    %v1807 = vpop.f32.mrb[0].mxu0
    %v1808 = vpop.f32.mrb[0].mxu0
    %1809 = vdwg.mxu0
    %v1810 = vmax.f32 %v1805, 0.0
    %v1811 = vld [vmem:[%s12 + $0x2] sm:$0x1]
    %v1812 = vlaneseq
    %v1813 = vshrl.u32 %v1812, 7
    %v1814 = vsub.s32 0, %v1813
    %v1815 = vrot.slane %v1811, %v1814
    %v1816 = vmul.f32 %v1810, %v1815
    %v1817 = vld [vmem:[%s12 + $0x3] sm:$0x1]
    %v1818 = vlaneseq
    %v1819 = vshrl.u32 %v1818, 7
    %v1820 = vsub.s32 0, %v1819
    %v1821 = vrot.slane %v1817, %v1820
    %v1822 = vadd.f32 %v1816, %v1821
    %v1823 = vld [vmem:[%s13] sm:$0xff]
    %v1824 = vld [vmem:[%s13 + $0x8] sm:$0xff]
    %v1825 = vld [vmem:[%s13 + $0x10] sm:$0xff]
    %v1826 = vld [vmem:[%s13 + $0x18] sm:$0xff]
    %v1827 = vld [vmem:[%s13 + $0x20] sm:$0xff]
    %v1828 = vpack.c.bf16 %v1822, %v1822
    %v1829 = vpack.c.bf16 %v1824, %v1823
    %v1830 = vpack.c.bf16 %v1826, %v1825
    %v1831 = vpack.c.bf16 %v1827, %v1827
    %v1832 = vld [vmem:[%s13 + $0x28] sm:$0x1]
    %v1833 = vlaneseq
    %v1834 = vshrl.u32 %v1833, 7
    %v1835 = vsub.s32 0, %v1834
    %v1836 = vrot.slane %v1832, %v1835
    %v1838 = vsel %vm892, %v1828, 0
    %v1841 = vsel %vm245, %v1831, 0
    %1843 = vmatprep.subr.bf16.mxu0 0
    %1844 = vmatpush1.bf16.msra.mxu0 %v1829
    %1845 = vmatprep.subr.bf16.mxu0 0
    %1846 = vmatpush1.bf16.msra.mxu0 %v1830
    %1847 = vmatprep.subr.bf16.mxu0 0
    %1848 = vmatpush1.bf16.msra.mxu0 %v1841
    %1849 = vmatprep.subr.bf16.mxu0 0
    %1850 = vmatpush1.bf16.msra.mxu0 0
    %1851 = vmatprep.subr.bf16.mxu0 0
    %1852 = vmatpush1.bf16.msra.mxu0 0
    %1853 = vmatprep.subr.bf16.mxu0 0
    %1854 = vmatpush1.bf16.msra.mxu0 0
    %1855 = vmatprep.subr.bf16.mxu0 0
    %1856 = vmatpush1.bf16.msra.mxu0 0
    %1857 = vmatprep.subr.bf16.mxu0 0
    %1858 = vmatpush1.bf16.msra.mxu0 0
    %1859 = vmatprep.subr.bf16.mxu0 0
    %1860 = vmatpush1.bf16.msra.mxu0 0
    %1861 = vmatprep.subr.bf16.mxu0 0
    %1862 = vmatpush1.bf16.msra.mxu0 0
    %1863 = vmatprep.subr.bf16.mxu0 0
    %1864 = vmatpush1.bf16.msra.mxu0 0
    %1865 = vmatprep.subr.bf16.mxu0 0
    %1866 = vmatpush1.bf16.msra.mxu0 0
    %1867 = vmatprep.subr.bf16.mxu0 0
    %1868 = vmatpush1.bf16.msra.mxu0 0
    %1869 = vmatprep.subr.bf16.mxu0 0
    %1870 = vmatpush1.bf16.msra.mxu0 0
    %1871 = vmatprep.subr.bf16.mxu0 0
    %1872 = vmatpush1.bf16.msra.mxu0 0
    %1873 = vmatprep.subr.bf16.mxu0 0
    %1874 = vmatpush1.bf16.msra.mxu0 0
    %1875 = vmatprep.mubr.bf16.mxu0 0
    %1876 = vmatmul.mubr.bf16.gmra.mrb[0].mxu0 %v1838
    %v1877 = vpop.f32.mrb[0].mxu0
    %v1878 = vadd.f32 %v1836, %v1877
    %v1879 = vpop.f32.mrb[0].mxu0
    %v1880 = vpop.f32.mrb[0].mxu0
    %v1881 = vpop.f32.mrb[0].mxu0
    %1882 = vdwg.mxu0
    %vm1883 = vcmask 17408
    %1884 = vst.msk [vmem:[#allocation13] sm:$0x3] %vm1883, %v1878
    // Predicated region
    $region74: #{tpu_custom_call.1} parent=1 // pred_check
      _
    $region75: #{tpu_custom_call.1} parent=1 // pred_check_branch
      %1886 = sbr.rel (0) target = $region77
    $region76: #{tpu_custom_call.1} parent=1 // pred_region
      %s1888 = ssub.s32 128, 128
      %1889 = vsyncadd [#allocation6], %s1888
      %s1891 = sshll.u32 [#allocation12], 4
      %s1892 = int_to_ptr.vmem [resolvable:$true] %s1891
      %1894 = dma.vmem_to_hbm [thread:$0]  %s1892, 128, %s14, [#allocation6]
    $region77: #{tpu_custom_call.1} parent=1 // pred_fallthru
      _
    // Predicated region
    $region78: #{tpu_custom_call.1} parent=1 // pred_check
      _
    $region79: #{tpu_custom_call.1} parent=1 // pred_check_branch
      %1896 = sbr.rel (0) target = $region81
    $region80: #{tpu_custom_call.1} parent=1 // pred_region
      %s1898 = ssub.s32 32, 32
      %1899 = vsyncadd [#allocation14], %s1898
      %s1901 = sshll.u32 [#allocation13], 4
      %s1902 = int_to_ptr.vmem [resolvable:$true] %s1901
      %1904 = dma.vmem_to_hbm [thread:$0]  %s1902, 32, %s15, [#allocation14]
    $region81: #{tpu_custom_call.1} parent=1 // pred_fallthru
      _
    // Predicated region
    $region82: #{tpu_custom_call.1} parent=1 // pred_check
      _
    $region83: #{tpu_custom_call.1} parent=1 // pred_check_branch
      %1906 = sbr.rel (0) target = $region85
    $region84: #{tpu_custom_call.1} parent=1 // pred_region
      _
    $region85: #{tpu_custom_call.1} parent=1 // pred_fallthru
      _
    // Predicated region
    $region86: #{tpu_custom_call.1} parent=1 // pred_check
      _
    $region87: #{tpu_custom_call.1} parent=1 // pred_check_branch
      %1908 = sbr.rel (0) target = $region89
    $region88: #{tpu_custom_call.1} parent=1 // pred_region
      %1909 = dma.done [#allocation6], 128
    $region89: #{tpu_custom_call.1} parent=1 // pred_fallthru
      _
    // Predicated region
    $region90: #{tpu_custom_call.1} parent=1 // pred_check
      _
    $region91: #{tpu_custom_call.1} parent=1 // pred_check_branch
      %1911 = sbr.rel (0) target = $region93
    $region92: #{tpu_custom_call.1} parent=1 // pred_region
      %1912 = dma.done [#allocation14], 32
    $region93: #{tpu_custom_call.1} parent=1 // pred_fallthru
      _
    // Predicated region
    $region94: #{tpu_custom_call.1} parent=1 // pred_check
      _
    $region95: #{tpu_custom_call.1} parent=1 // pred_check_branch
      %1914 = sbr.rel (0) target = $region97
    $region96: #{tpu_custom_call.1} parent=1 // pred_region
      _
    $region97: #{tpu_custom_call.1} parent=1 // pred_fallthru
      _
    %1915 = vsyncpa [#allocation5], 1
    %1916 = vsyncpa [#allocation8], 1
    %1917 = vsyncpa [#allocation11], 1
    %1918 = vsyncpa [#allocation6], 1
    %1919 = vsyncpa [#allocation14], 1

</llo_original>
